<compile_context>
chip_gen: v5e
topology: v5e:2x2
jax: 0.10.0
libtpu: 0.0.40
codegen_flags: <defaults>
</compile_context>

<pallas_src>
import jax
import jax.numpy as jnp
import numpy as np
from jax.experimental import pallas as pl
from jax.experimental.pallas import tpu as pltpu

# ---------------- small synthetic configuration -------------------------------
# Consistent with VisionTransformer(image_size=16, embedding_dim=32, image_patches=8)
BATCH = 2
CHANNELS = 3
IMAGE_SIZE = 16
PATCH = 8
NUM_PATCHES = (IMAGE_SIZE // PATCH) ** 2        # 4   (== self._num_patches)
SEQ = NUM_PATCHES + 1                           # 5   (+1 CLS token)
HIDDEN = 32                                     # ViT hidden_size (small synthetic)
NUM_HEADS = 2
HEAD_DIM = HIDDEN // NUM_HEADS                  # 16
MLP = 4 * HIDDEN                                # 128
NUM_LAYERS = 2
EMBED_DIM = 32                                  # embedding_dim of the wrapping nn.Linear
CPP = CHANNELS * PATCH * PATCH                  # 192 (flattened patch size)
EPS = 1e-12                                     # HF transformers.ViTModel layer_norm_eps
SCALE = 1.0 / float(np.sqrt(HEAD_DIM))

assert EMBED_DIM == HIDDEN, "misc-slab packing below assumes EMBED_DIM == HIDDEN"

# ---- packed-slab layout constants ---------------------------------------------
# per-layer weight slab: (NUM_LAYERS, HIDDEN, W_SLAB) = [wq|wk|wv | wo | w1 | w2^T]
W_QKV_OFF = 0
W_O_OFF = 3 * HIDDEN            # 96
W_1_OFF = W_O_OFF + HIDDEN      # 128
W_2T_OFF = W_1_OFF + MLP        # 256
W_SLAB = W_2T_OFF + MLP         # 384
# per-layer vector slab: (NUM_LAYERS, 8, VEC_W) rows = ln1_w, ln1_b, bqkv, bo, ln2_w, ln2_b, b1, b2
VEC_W = MLP                     # 128 (full lane width)
# misc slab: (MISC_ROWS, HIDDEN) rows = w_patch | w_out | small vectors | pos(+pad)
MISC_WPATCH = 0
MISC_WOUT = CPP                 # 192
MISC_SMALL = CPP + HIDDEN       # 224  (b_patch, cls, lnf_w, lnf_b, b_out, pad x3)
MISC_POS = MISC_SMALL + 8       # 232
MISC_ROWS = MISC_POS + 8        # 240


# ---------------- math helpers (shared by kernel and reference) ----------------
def _layer_norm(x, w, b):
    mu = jnp.mean(x, axis=-1, keepdims=True)
    xc = x - mu
    var = jnp.mean(xc * xc, axis=-1, keepdims=True)
    return xc * jax.lax.rsqrt(var + EPS) * w + b


def _softmax(s):
    s = s - jnp.max(s, axis=-1, keepdims=True)
    e = jnp.exp(s)
    return e / jnp.sum(e, axis=-1, keepdims=True)


def _gelu(x):
    # TODO(synk): HF ViT uses exact erf-GELU; erf has no guaranteed Mosaic lowering,
    # so the tanh approximation is used here (numerically ~1e-3 close).
    return jax.nn.gelu(x, approximate=True)


def _dot(a, b):
    return jnp.dot(a, b, preferred_element_type=jnp.float32)


def _dot_nt(a, b):  # a @ b.T, contracting on the last dim of both (no explicit transpose)
    return jax.lax.dot_general(a, b, (((1,), (1,)), ((), ())),
                               preferred_element_type=jnp.float32)


# ---------------- Pallas kernel ------------------------------------------------
def vit_kernel(patches_ref, wl_ref, vl_ref, misc_ref, out_ref, x_scr, ctx_scr):
    H, HD, H3 = HIDDEN, HEAD_DIM, 3 * HIDDEN

    # Unpack the misc slab once (static, 8-row-aligned slices).
    w_patch = misc_ref[MISC_WPATCH:MISC_WPATCH + CPP, :]          # (CPP, H)
    w_out = misc_ref[MISC_WOUT:MISC_WOUT + H, :]                  # (H, E)
    small = misc_ref[MISC_SMALL:MISC_SMALL + 8, :]                # (8, H)
    b_patch, cls_tok = small[0:1, :], small[1:2, :]
    lnf_w, lnf_b, b_out = small[2:3, :], small[3:4, :], small[4:5, :]
    pos = misc_ref[MISC_POS:MISC_POS + SEQ, :]                    # (SEQ, H)

    out_rows = []
    for b in range(BATCH):                                        # unrolled; no grid steps
        # Patch embedding (Conv2d(k=P, stride=P) as a matmul) + CLS + pos-emb,
        # assembled via scratch-row writes (no sublane concatenation).
        xp = _dot(patches_ref[b], w_patch) + b_patch              # (N, H)
        x_scr[0:1, :] = cls_tok + pos[0:1, :]
        x_scr[1:SEQ, :] = xp + pos[1:SEQ, :]
        x = x_scr[...]                                            # (S, H)

        for l in range(NUM_LAYERS):
            wl = wl_ref[l]                                        # (H, W_SLAB)
            vl = vl_ref[l]                                        # (8, VEC_W)
            w_qkv = wl[:, W_QKV_OFF:W_QKV_OFF + H3]
            w_o = wl[:, W_O_OFF:W_O_OFF + H]
            w_1 = wl[:, W_1_OFF:W_1_OFF + MLP]
            w_2t = wl[:, W_2T_OFF:W_2T_OFF + MLP]                 # w2 stored transposed
            ln1_w, ln1_b = vl[0:1, :H], vl[1:2, :H]
            b_qkv, b_o = vl[2:3, :H3], vl[3:4, :H]
            ln2_w, ln2_b = vl[4:5, :H], vl[5:6, :H]
            b_1, b_2 = vl[6:7, :MLP], vl[7:8, :H]

            # --- pre-LN multi-head self-attention (fused QKV) ---
            hn = _layer_norm(x, ln1_w, ln1_b)
            qkv = _dot(hn, w_qkv) + b_qkv                         # (S, 3H)
            for hh in range(NUM_HEADS):
                q_h = qkv[:, hh * HD:(hh + 1) * HD]
                k_h = qkv[:, H + hh * HD:H + (hh + 1) * HD]
                v_h = qkv[:, 2 * H + hh * HD:2 * H + (hh + 1) * HD]
                s = _dot_nt(q_h, k_h) * SCALE                     # (S, S)
                # write each head's context at its static lane offset (no concat)
                ctx_scr[:, hh * HD:(hh + 1) * HD] = _dot(_softmax(s), v_h)
            x = x + _dot(ctx_scr[...], w_o) + b_o

            # --- pre-LN MLP ---
            hn2 = _layer_norm(x, ln2_w, ln2_b)
            m = _gelu(_dot(hn2, w_1) + b_1)                       # (S, MLP)
            m = _dot_nt(m, w_2t) + b_2                            # (S, H)
            x = x + m

        # Final LayerNorm -> last_hidden_state; drop CLS; wrapping Linear.
        x = _layer_norm(x, lnf_w, lnf_b)                          # (S, H)
        toks = x[1:1 + NUM_PATCHES]                               # (N, H)
        o = _dot(toks, w_out) + b_out                             # (N, E)
        # Flatten to a lane-dense (1, N*E) = (1, 128) row.
        out_rows.append(jnp.concatenate(
            [o[i:i + 1, :] for i in range(NUM_PATCHES)], axis=1))

    # Single unmasked full-lane store of the whole (B, N*E) output slab.
    out_ref[...] = jnp.concatenate(out_rows, axis=0)


# ---------------- glue / wrapper -----------------------------------------------
def extract_patches(x):
    """NCHW [B,C,H,W] -> [B, num_patches, C*P*P] (matches Conv2d flatten order)."""
    B, C, Hh, Ww = x.shape
    hp, wp = Hh // PATCH, Ww // PATCH
    x = x.reshape(B, C, hp, PATCH, wp, PATCH)
    x = x.transpose(0, 2, 4, 1, 3, 5)            # B, hp, wp, C, P, P
    return x.reshape(B, hp * wp, C * PATCH * PATCH)


def pack_params(params):
    """Pack the 24 logical parameter arrays into 3 slabs consumed by the kernel."""
    (w_patch, b_patch, cls_tok, pos_emb, ln1_w, ln1_b, wq, bq, wk, bk, wv, bv,
     wo, bo, ln2_w, ln2_b, w1, b1, w2, b2, lnf_w, lnf_b, w_out, b_out) = params

    # per-layer matmul weights: [wq|wk|wv | wo | w1 | w2^T] along the lane axis
    wqkv = jnp.concatenate([wq, wk, wv], axis=-1)                 # (L, H, 3H)
    w2t = jnp.transpose(w2, (0, 2, 1))                            # (L, H, MLP)
    w_layers = jnp.concatenate([wqkv, wo, w1, w2t], axis=-1)      # (L, H, W_SLAB)

    # per-layer LN params & biases: one (8, 128) vreg per layer
    bqkv = jnp.concatenate([bq, bk, bv], axis=-1)                 # (L, 1, 3H)

    def padw(v):
        return jnp.pad(v, ((0, 0), (0, 0), (0, VEC_W - v.shape[-1])))

    vec_layers = jnp.concatenate(
        [padw(v) for v in (ln1_w, ln1_b, bqkv, bo, ln2_w, ln2_b, b1, b2)],
        axis=1)                                                   # (L, 8, VEC_W)

    # misc slab: patch-embed weight, output weight, small vectors, position embeddings
    small = jnp.concatenate(
        [b_patch, cls_tok, lnf_w[0], lnf_b[0], b_out,
         jnp.zeros((3, HIDDEN), jnp.float32)], axis=0)            # (8, H)
    pos_pad = jnp.concatenate(
        [pos_emb, jnp.zeros((8 - SEQ, HIDDEN), jnp.float32)], axis=0)  # (8, H)
    misc = jnp.concatenate([w_patch, w_out, small, pos_pad], axis=0)   # (MISC_ROWS, H)
    return (w_layers.astype(jnp.float32),
            vec_layers.astype(jnp.float32),
            misc.astype(jnp.float32))


def vision_transformer_forward(x, params):
    patches = extract_patches(x).astype(jnp.float32)              # (B, N, CPP)
    w_layers, vec_layers, misc = pack_params(params)

    out = pl.pallas_call(
        vit_kernel,
        out_shape=jax.ShapeDtypeStruct((BATCH, NUM_PATCHES * EMBED_DIM), jnp.float32),
        grid=(1,),                                                # single invocation; batch looped in-kernel
        in_specs=[
            pl.BlockSpec((BATCH, NUM_PATCHES, CPP), lambda i: (0, 0, 0)),
            pl.BlockSpec((NUM_LAYERS, HIDDEN, W_SLAB), lambda i: (0, 0, 0)),
            pl.BlockSpec((NUM_LAYERS, 8, VEC_W), lambda i: (0, 0, 0)),
            pl.BlockSpec((MISC_ROWS, HIDDEN), lambda i: (0, 0)),
        ],
        out_specs=pl.BlockSpec((BATCH, NUM_PATCHES * EMBED_DIM), lambda i: (0, 0)),
        scratch_shapes=[pltpu.VMEM((SEQ, HIDDEN), jnp.float32),   # x assembly
                        pltpu.VMEM((SEQ, HIDDEN), jnp.float32)],  # per-head context
        compiler_params=pltpu.CompilerParams(dimension_semantics=("arbitrary",)),
    )(patches, w_layers, vec_layers, misc)

    # (B, N*E) -> (B, N, E) -> permute(1, 0, 2) -> (N, B, E)
    out = out.reshape(BATCH, NUM_PATCHES, EMBED_DIM)
    return jnp.transpose(out, (1, 0, 2))


# ---------------- deterministic synthetic parameters --------------------------
def make_params(key):
    ks = jax.random.split(key, 24)

    def n(k, shape, s=0.02):
        return (s * jax.random.normal(k, shape)).astype(jnp.float32)

    w_patch = n(ks[0], (CPP, HIDDEN))
    b_patch = n(ks[1], (1, HIDDEN))
    cls_tok = n(ks[2], (1, HIDDEN))
    pos_emb = n(ks[3], (SEQ, HIDDEN))
    ln1_w = (1.0 + n(ks[4], (NUM_LAYERS, 1, HIDDEN))).astype(jnp.float32)
    ln1_b = n(ks[5], (NUM_LAYERS, 1, HIDDEN))
    wq = n(ks[6], (NUM_LAYERS, HIDDEN, HIDDEN)); bq = n(ks[7], (NUM_LAYERS, 1, HIDDEN))
    wk = n(ks[8], (NUM_LAYERS, HIDDEN, HIDDEN)); bk = n(ks[9], (NUM_LAYERS, 1, HIDDEN))
    wv = n(ks[10], (NUM_LAYERS, HIDDEN, HIDDEN)); bv = n(ks[11], (NUM_LAYERS, 1, HIDDEN))
    wo = n(ks[12], (NUM_LAYERS, HIDDEN, HIDDEN)); bo = n(ks[13], (NUM_LAYERS, 1, HIDDEN))
    ln2_w = (1.0 + n(ks[14], (NUM_LAYERS, 1, HIDDEN))).astype(jnp.float32)
    ln2_b = n(ks[15], (NUM_LAYERS, 1, HIDDEN))
    w1 = n(ks[16], (NUM_LAYERS, HIDDEN, MLP)); b1 = n(ks[17], (NUM_LAYERS, 1, MLP))
    w2 = n(ks[18], (NUM_LAYERS, MLP, HIDDEN)); b2 = n(ks[19], (NUM_LAYERS, 1, HIDDEN))
    lnf_w = (1.0 + n(ks[20], (1, 1, HIDDEN))).astype(jnp.float32)
    lnf_b = n(ks[21], (1, 1, HIDDEN))
    w_out = n(ks[22], (HIDDEN, EMBED_DIM))
    b_out = n(ks[23], (1, EMBED_DIM))

    return (w_patch, b_patch, cls_tok, pos_emb,
            ln1_w, ln1_b, wq, bq, wk, bk, wv, bv, wo, bo,
            ln2_w, ln2_b, w1, b1, w2, b2,
            lnf_w, lnf_b, w_out, b_out)


# ---------------- pure-JAX reference (for a correctness check) -----------------
def reference_forward(x, params):
    (w_patch, b_patch, cls_tok, pos_emb, ln1_w, ln1_b, wq, bq, wk, bk, wv, bv,
     wo, bo, ln2_w, ln2_b, w1, b1, w2, b2, lnf_w, lnf_b, w_out, b_out) = params
    patches = extract_patches(x).astype(jnp.float32)
    outs = []
    for b in range(BATCH):
        xp = patches[b] @ w_patch + b_patch
        h = jnp.concatenate([cls_tok, xp], 0) + pos_emb
        for l in range(NUM_LAYERS):
            hn = _layer_norm(h, ln1_w[l], ln1_b[l])
            q = hn @ wq[l] + bq[l]
            k = hn @ wk[l] + bk[l]
            v = hn @ wv[l] + bv[l]
            ctxs = []
            for hh in range(NUM_HEADS):
                sl = slice(hh * HEAD_DIM, (hh + 1) * HEAD_DIM)
                s = (q[:, sl] @ k[:, sl].T) * SCALE
                ctxs.append(_softmax(s) @ v[:, sl])
            h = h + (jnp.concatenate(ctxs, -1) @ wo[l] + bo[l])
            hn2 = _layer_norm(h, ln2_w[l], ln2_b[l])
            h = h + (_gelu(hn2 @ w1[l] + b1[l]) @ w2[l] + b2[l])
        h = _layer_norm(h, lnf_w[0], lnf_b[0])
        outs.append(h[1:1 + NUM_PATCHES] @ w_out + b_out)
    return jnp.transpose(jnp.stack(outs, 0), (1, 0, 2))


# ---------------- main ----------------------------------------------------------
if __name__ == "__main__":
    key = jax.random.PRNGKey(0)
    k_x, k_p = jax.random.split(key)
    x = jax.random.normal(k_x, (BATCH, CHANNELS, IMAGE_SIZE, IMAGE_SIZE), jnp.float32)
    params = make_params(k_p)

    out = vision_transformer_forward(x, params)
    out = jax.block_until_ready(out)

    assert out.shape == (NUM_PATCHES, BATCH, EMBED_DIM), out.shape

    ref = reference_forward(x, params)
    np.testing.assert_allclose(np.asarray(out), np.asarray(ref), rtol=1e-4, atol=1e-4)

    print("KERNEL_OK")
</pallas_src>

<mosaic_0001>
module attributes {stable_mosaic.version = 11 : i64} {
  func.func @vit_kernel(%arg0: i32, %arg1: memref<2x4x192xf32, #tpu.memory_space<vmem>>, %arg2: memref<2x32x384xf32, #tpu.memory_space<vmem>>, %arg3: memref<2x8x128xf32, #tpu.memory_space<vmem>>, %arg4: memref<240x32xf32, #tpu.memory_space<vmem>>, %arg5: memref<2x128xf32, #tpu.memory_space<vmem>>, %arg6: memref<5x32xf32, #tpu.memory_space<vmem>>, %arg7: memref<5x32xf32, #tpu.memory_space<vmem>>) attributes {dimension_semantics = [#tpu.dimension_semantics<arbitrary>], iteration_bounds = array<i64: 1>, scalar_prefetch = 0 : i64, scratch_operands = 2 : i64, tpu.core_type = #tpu.core_type<tc>, window_params = [{pipeline_mode = #tpu.pipeline_mode<synchronous>, transform_indices = @transform_0, window_bounds = array<i64: 2, 4, 192>}, {pipeline_mode = #tpu.pipeline_mode<synchronous>, transform_indices = @transform_1, window_bounds = array<i64: 2, 32, 384>}, {pipeline_mode = #tpu.pipeline_mode<synchronous>, transform_indices = @transform_2, window_bounds = array<i64: 2, 8, 128>}, {pipeline_mode = #tpu.pipeline_mode<synchronous>, transform_indices = @transform_3, window_bounds = array<i64: 240, 32>}, {pipeline_mode = #tpu.pipeline_mode<synchronous>, transform_indices = @transform_4, window_bounds = array<i64: 2, 128>}]} {
    %c0 = arith.constant 0 : index
    %c0_0 = arith.constant 0 : index
    %0 = vector.load %arg4[%c0, %c0_0] : memref<240x32xf32, #tpu.memory_space<vmem>>, vector<192x32xf32>
    %c192 = arith.constant 192 : index
    %c0_1 = arith.constant 0 : index
    %1 = vector.load %arg4[%c192, %c0_1] : memref<240x32xf32, #tpu.memory_space<vmem>>, vector<32x32xf32>
    %c224 = arith.constant 224 : index
    %c0_2 = arith.constant 0 : index
    %2 = vector.load %arg4[%c224, %c0_2] : memref<240x32xf32, #tpu.memory_space<vmem>>, vector<8x32xf32>
    %3 = vector.extract_strided_slice %2 {offsets = [0, 0], sizes = [1, 32], strides = [1, 1]} : vector<8x32xf32> to vector<1x32xf32>
    %4 = vector.extract_strided_slice %2 {offsets = [1, 0], sizes = [1, 32], strides = [1, 1]} : vector<8x32xf32> to vector<1x32xf32>
    %5 = vector.extract_strided_slice %2 {offsets = [2, 0], sizes = [1, 32], strides = [1, 1]} : vector<8x32xf32> to vector<1x32xf32>
    %6 = vector.extract_strided_slice %2 {offsets = [3, 0], sizes = [1, 32], strides = [1, 1]} : vector<8x32xf32> to vector<1x32xf32>
    %7 = vector.extract_strided_slice %2 {offsets = [4, 0], sizes = [1, 32], strides = [1, 1]} : vector<8x32xf32> to vector<1x32xf32>
    %c232 = arith.constant 232 : index
    %c0_3 = arith.constant 0 : index
    %8 = vector.load %arg4[%c232, %c0_3] : memref<240x32xf32, #tpu.memory_space<vmem>>, vector<5x32xf32>
    %c0_4 = arith.constant 0 : index
    %c0_5 = arith.constant 0 : index
    %c0_6 = arith.constant 0 : index
    %9 = vector.load %arg1[%c0_4, %c0_5, %c0_6] : memref<2x4x192xf32, #tpu.memory_space<vmem>>, vector<1x4x192xf32>
    %10 = vector.shape_cast %9 : vector<1x4x192xf32> to vector<4x192xf32>
    %cst = arith.constant dense<0.000000e+00> : vector<4x32xf32>
    %11 = tpu.matmul %10, %0, %cst {dimension_numbers = #tpu.dot_dimension_numbers<[1], [0], [0], [1], [0, 0, 1, 1], [], []>} : vector<4x192xf32>, vector<192x32xf32>, vector<4x32xf32> -> vector<4x32xf32>
    %12 = vector.broadcast %3 : vector<1x32xf32> to vector<4x32xf32>
    %13 = arith.addf %11, %12 : vector<4x32xf32>
    %14 = vector.extract_strided_slice %8 {offsets = [0, 0], sizes = [1, 32], strides = [1, 1]} : vector<5x32xf32> to vector<1x32xf32>
    %15 = arith.addf %4, %14 : vector<1x32xf32>
    %c0_7 = arith.constant 0 : index
    %c0_8 = arith.constant 0 : index
    %16 = vector.load %arg6[%c0_7, %c0_8] : memref<5x32xf32, #tpu.memory_space<vmem>>, vector<1x32xf32>
    tpu.vector_store %arg6[%c0_7, %c0_8], %15 {strides = array<i32>} : memref<5x32xf32, #tpu.memory_space<vmem>>, vector<1x32xf32>,
    %17 = vector.extract_strided_slice %8 {offsets = [1, 0], sizes = [4, 32], strides = [1, 1]} : vector<5x32xf32> to vector<4x32xf32>
    %18 = arith.addf %13, %17 : vector<4x32xf32>
    %c1 = arith.constant 1 : index
    %c0_9 = arith.constant 0 : index
    %19 = vector.load %arg6[%c1, %c0_9] : memref<5x32xf32, #tpu.memory_space<vmem>>, vector<4x32xf32>
    tpu.vector_store %arg6[%c1, %c0_9], %18 {strides = array<i32>} : memref<5x32xf32, #tpu.memory_space<vmem>>, vector<4x32xf32>,
    %c0_10 = arith.constant 0 : index
    %c0_11 = arith.constant 0 : index
    %20 = vector.load %arg6[%c0_10, %c0_11] : memref<5x32xf32, #tpu.memory_space<vmem>>, vector<5x32xf32>
    %c0_12 = arith.constant 0 : index
    %c0_13 = arith.constant 0 : index
    %c0_14 = arith.constant 0 : index
    %21 = vector.load %arg2[%c0_12, %c0_13, %c0_14] : memref<2x32x384xf32, #tpu.memory_space<vmem>>, vector<1x32x384xf32>
    %22 = vector.shape_cast %21 : vector<1x32x384xf32> to vector<32x384xf32>
    %c0_15 = arith.constant 0 : index
    %c0_16 = arith.constant 0 : index
    %c0_17 = arith.constant 0 : index
    %23 = vector.load %arg3[%c0_15, %c0_16, %c0_17] : memref<2x8x128xf32, #tpu.memory_space<vmem>>, vector<1x8x128xf32>
    %24 = vector.shape_cast %23 : vector<1x8x128xf32> to vector<8x128xf32>
    %25 = vector.extract_strided_slice %22 {offsets = [0, 0], sizes = [32, 96], strides = [1, 1]} : vector<32x384xf32> to vector<32x96xf32>
    %26 = vector.extract_strided_slice %22 {offsets = [0, 96], sizes = [32, 32], strides = [1, 1]} : vector<32x384xf32> to vector<32x32xf32>
    %27 = vector.extract_strided_slice %22 {offsets = [0, 128], sizes = [32, 128], strides = [1, 1]} : vector<32x384xf32> to vector<32x128xf32>
    %28 = vector.extract_strided_slice %22 {offsets = [0, 256], sizes = [32, 128], strides = [1, 1]} : vector<32x384xf32> to vector<32x128xf32>
    %29 = vector.extract_strided_slice %24 {offsets = [0, 0], sizes = [1, 32], strides = [1, 1]} : vector<8x128xf32> to vector<1x32xf32>
    %30 = vector.extract_strided_slice %24 {offsets = [1, 0], sizes = [1, 32], strides = [1, 1]} : vector<8x128xf32> to vector<1x32xf32>
    %31 = vector.extract_strided_slice %24 {offsets = [2, 0], sizes = [1, 96], strides = [1, 1]} : vector<8x128xf32> to vector<1x96xf32>
    %32 = vector.extract_strided_slice %24 {offsets = [3, 0], sizes = [1, 32], strides = [1, 1]} : vector<8x128xf32> to vector<1x32xf32>
    %33 = vector.extract_strided_slice %24 {offsets = [4, 0], sizes = [1, 32], strides = [1, 1]} : vector<8x128xf32> to vector<1x32xf32>
    %34 = vector.extract_strided_slice %24 {offsets = [5, 0], sizes = [1, 32], strides = [1, 1]} : vector<8x128xf32> to vector<1x32xf32>
    %35 = vector.extract_strided_slice %24 {offsets = [6, 0], sizes = [1, 128], strides = [1, 1]} : vector<8x128xf32> to vector<1x128xf32>
    %36 = vector.extract_strided_slice %24 {offsets = [7, 0], sizes = [1, 32], strides = [1, 1]} : vector<8x128xf32> to vector<1x32xf32>
    %cst_18 = arith.constant dense<0.000000e+00> : vector<5xf32>
    %37 = vector.multi_reduction <add>, %20, %cst_18 [1] : vector<5x32xf32> to vector<5xf32>
    %38 = vector.shape_cast %37 : vector<5xf32> to vector<5x1xf32>
    %cst_19 = arith.constant 3.200000e+01 : f32
    %39 = vector.broadcast %cst_19 : f32 to vector<5x1xf32>
    %40 = arith.divf %38, %39 : vector<5x1xf32>
    %41 = vector.broadcast %40 : vector<5x1xf32> to vector<5x32xf32>
    %42 = arith.subf %20, %41 : vector<5x32xf32>
    %43 = arith.mulf %42, %42 : vector<5x32xf32>
    %cst_20 = arith.constant dense<0.000000e+00> : vector<5xf32>
    %44 = vector.multi_reduction <add>, %43, %cst_20 [1] : vector<5x32xf32> to vector<5xf32>
    %45 = vector.shape_cast %44 : vector<5xf32> to vector<5x1xf32>
    %cst_21 = arith.constant 3.200000e+01 : f32
    %46 = vector.broadcast %cst_21 : f32 to vector<5x1xf32>
    %47 = arith.divf %45, %46 : vector<5x1xf32>
    %cst_22 = arith.constant 9.99999996E-13 : f32
    %48 = vector.broadcast %cst_22 : f32 to vector<5x1xf32>
    %49 = arith.addf %47, %48 : vector<5x1xf32>
    %50 = math.rsqrt %49 : vector<5x1xf32>
    %51 = vector.broadcast %50 : vector<5x1xf32> to vector<5x32xf32>
    %52 = arith.mulf %42, %51 : vector<5x32xf32>
    %53 = vector.broadcast %29 : vector<1x32xf32> to vector<5x32xf32>
    %54 = arith.mulf %52, %53 : vector<5x32xf32>
    %55 = vector.broadcast %30 : vector<1x32xf32> to vector<5x32xf32>
    %56 = arith.addf %54, %55 : vector<5x32xf32>
    %cst_23 = arith.constant dense<0.000000e+00> : vector<5x96xf32>
    %57 = tpu.matmul %56, %25, %cst_23 {dimension_numbers = #tpu.dot_dimension_numbers<[1], [0], [0], [1], [0, 0, 1, 1], [], []>} : vector<5x32xf32>, vector<32x96xf32>, vector<5x96xf32> -> vector<5x96xf32>
    %58 = vector.broadcast %31 : vector<1x96xf32> to vector<5x96xf32>
    %59 = arith.addf %57, %58 : vector<5x96xf32>
    %60 = vector.extract_strided_slice %59 {offsets = [0, 0], sizes = [5, 16], strides = [1, 1]} : vector<5x96xf32> to vector<5x16xf32>
    %61 = vector.extract_strided_slice %59 {offsets = [0, 32], sizes = [5, 16], strides = [1, 1]} : vector<5x96xf32> to vector<5x16xf32>
    %62 = vector.extract_strided_slice %59 {offsets = [0, 64], sizes = [5, 16], strides = [1, 1]} : vector<5x96xf32> to vector<5x16xf32>
    %cst_24 = arith.constant dense<0.000000e+00> : vector<5x5xf32>
    %63 = tpu.matmul %60, %61, %cst_24 {dimension_numbers = #tpu.dot_dimension_numbers<[1], [1], [0], [0], [0, 0, 1, 0], [], []>} : vector<5x16xf32>, vector<5x16xf32>, vector<5x5xf32> -> vector<5x5xf32>
    %cst_25 = arith.constant 2.500000e-01 : f32
    %64 = vector.broadcast %cst_25 : f32 to vector<5x5xf32>
    %65 = arith.mulf %63, %64 : vector<5x5xf32>
    %cst_26 = arith.constant dense<0xFF800000> : vector<5xf32>
    %66 = vector.multi_reduction <maximumf>, %65, %cst_26 [1] : vector<5x5xf32> to vector<5xf32>
    %67 = vector.shape_cast %66 : vector<5xf32> to vector<5x1xf32>
    %68 = vector.broadcast %67 : vector<5x1xf32> to vector<5x5xf32>
    %69 = arith.subf %65, %68 : vector<5x5xf32>
    %70 = math.exp %69 : vector<5x5xf32>
    %cst_27 = arith.constant dense<0.000000e+00> : vector<5xf32>
    %71 = vector.multi_reduction <add>, %70, %cst_27 [1] : vector<5x5xf32> to vector<5xf32>
    %72 = vector.shape_cast %71 : vector<5xf32> to vector<5x1xf32>
    %73 = vector.broadcast %72 : vector<5x1xf32> to vector<5x5xf32>
    %74 = arith.divf %70, %73 : vector<5x5xf32>
    %cst_28 = arith.constant dense<0.000000e+00> : vector<5x16xf32>
    %75 = tpu.matmul %74, %62, %cst_28 {dimension_numbers = #tpu.dot_dimension_numbers<[1], [0], [0], [1], [0, 0, 1, 1], [], []>} : vector<5x5xf32>, vector<5x16xf32>, vector<5x16xf32> -> vector<5x16xf32>
    %c0_29 = arith.constant 0 : index
    %c0_30 = arith.constant 0 : index
    %76 = vector.load %arg7[%c0_29, %c0_30] : memref<5x32xf32, #tpu.memory_space<vmem>>, vector<5x16xf32>
    tpu.vector_store %arg7[%c0_29, %c0_30], %75 {strides = array<i32>} : memref<5x32xf32, #tpu.memory_space<vmem>>, vector<5x16xf32>,
    %77 = vector.extract_strided_slice %59 {offsets = [0, 16], sizes = [5, 16], strides = [1, 1]} : vector<5x96xf32> to vector<5x16xf32>
    %78 = vector.extract_strided_slice %59 {offsets = [0, 48], sizes = [5, 16], strides = [1, 1]} : vector<5x96xf32> to vector<5x16xf32>
    %79 = vector.extract_strided_slice %59 {offsets = [0, 80], sizes = [5, 16], strides = [1, 1]} : vector<5x96xf32> to vector<5x16xf32>
    %cst_31 = arith.constant dense<0.000000e+00> : vector<5x5xf32>
    %80 = tpu.matmul %77, %78, %cst_31 {dimension_numbers = #tpu.dot_dimension_numbers<[1], [1], [0], [0], [0, 0, 1, 0], [], []>} : vector<5x16xf32>, vector<5x16xf32>, vector<5x5xf32> -> vector<5x5xf32>
    %cst_32 = arith.constant 2.500000e-01 : f32
    %81 = vector.broadcast %cst_32 : f32 to vector<5x5xf32>
    %82 = arith.mulf %80, %81 : vector<5x5xf32>
    %cst_33 = arith.constant dense<0xFF800000> : vector<5xf32>
    %83 = vector.multi_reduction <maximumf>, %82, %cst_33 [1] : vector<5x5xf32> to vector<5xf32>
    %84 = vector.shape_cast %83 : vector<5xf32> to vector<5x1xf32>
    %85 = vector.broadcast %84 : vector<5x1xf32> to vector<5x5xf32>
    %86 = arith.subf %82, %85 : vector<5x5xf32>
    %87 = math.exp %86 : vector<5x5xf32>
    %cst_34 = arith.constant dense<0.000000e+00> : vector<5xf32>
    %88 = vector.multi_reduction <add>, %87, %cst_34 [1] : vector<5x5xf32> to vector<5xf32>
    %89 = vector.shape_cast %88 : vector<5xf32> to vector<5x1xf32>
    %90 = vector.broadcast %89 : vector<5x1xf32> to vector<5x5xf32>
    %91 = arith.divf %87, %90 : vector<5x5xf32>
    %cst_35 = arith.constant dense<0.000000e+00> : vector<5x16xf32>
    %92 = tpu.matmul %91, %79, %cst_35 {dimension_numbers = #tpu.dot_dimension_numbers<[1], [0], [0], [1], [0, 0, 1, 1], [], []>} : vector<5x5xf32>, vector<5x16xf32>, vector<5x16xf32> -> vector<5x16xf32>
    %c0_36 = arith.constant 0 : index
    %c16 = arith.constant 16 : index
    %93 = vector.load %arg7[%c0_36, %c16] : memref<5x32xf32, #tpu.memory_space<vmem>>, vector<5x16xf32>
    tpu.vector_store %arg7[%c0_36, %c16], %92 {strides = array<i32>} : memref<5x32xf32, #tpu.memory_space<vmem>>, vector<5x16xf32>,
    %c0_37 = arith.constant 0 : index
    %c0_38 = arith.constant 0 : index
    %94 = vector.load %arg7[%c0_37, %c0_38] : memref<5x32xf32, #tpu.memory_space<vmem>>, vector<5x32xf32>
    %cst_39 = arith.constant dense<0.000000e+00> : vector<5x32xf32>
    %95 = tpu.matmul %94, %26, %cst_39 {dimension_numbers = #tpu.dot_dimension_numbers<[1], [0], [0], [1], [0, 0, 1, 1], [], []>} : vector<5x32xf32>, vector<32x32xf32>, vector<5x32xf32> -> vector<5x32xf32>
    %96 = arith.addf %20, %95 : vector<5x32xf32>
    %97 = vector.broadcast %32 : vector<1x32xf32> to vector<5x32xf32>
    %98 = arith.addf %96, %97 : vector<5x32xf32>
    %cst_40 = arith.constant dense<0.000000e+00> : vector<5xf32>
    %99 = vector.multi_reduction <add>, %98, %cst_40 [1] : vector<5x32xf32> to vector<5xf32>
    %100 = vector.shape_cast %99 : vector<5xf32> to vector<5x1xf32>
    %cst_41 = arith.constant 3.200000e+01 : f32
    %101 = vector.broadcast %cst_41 : f32 to vector<5x1xf32>
    %102 = arith.divf %100, %101 : vector<5x1xf32>
    %103 = vector.broadcast %102 : vector<5x1xf32> to vector<5x32xf32>
    %104 = arith.subf %98, %103 : vector<5x32xf32>
    %105 = arith.mulf %104, %104 : vector<5x32xf32>
    %cst_42 = arith.constant dense<0.000000e+00> : vector<5xf32>
    %106 = vector.multi_reduction <add>, %105, %cst_42 [1] : vector<5x32xf32> to vector<5xf32>
    %107 = vector.shape_cast %106 : vector<5xf32> to vector<5x1xf32>
    %cst_43 = arith.constant 3.200000e+01 : f32
    %108 = vector.broadcast %cst_43 : f32 to vector<5x1xf32>
    %109 = arith.divf %107, %108 : vector<5x1xf32>
    %cst_44 = arith.constant 9.99999996E-13 : f32
    %110 = vector.broadcast %cst_44 : f32 to vector<5x1xf32>
    %111 = arith.addf %109, %110 : vector<5x1xf32>
    %112 = math.rsqrt %111 : vector<5x1xf32>
    %113 = vector.broadcast %112 : vector<5x1xf32> to vector<5x32xf32>
    %114 = arith.mulf %104, %113 : vector<5x32xf32>
    %115 = vector.broadcast %33 : vector<1x32xf32> to vector<5x32xf32>
    %116 = arith.mulf %114, %115 : vector<5x32xf32>
    %117 = vector.broadcast %34 : vector<1x32xf32> to vector<5x32xf32>
    %118 = arith.addf %116, %117 : vector<5x32xf32>
    %cst_45 = arith.constant dense<0.000000e+00> : vector<5x128xf32>
    %119 = tpu.matmul %118, %27, %cst_45 {dimension_numbers = #tpu.dot_dimension_numbers<[1], [0], [0], [1], [0, 0, 1, 1], [], []>} : vector<5x32xf32>, vector<32x128xf32>, vector<5x128xf32> -> vector<5x128xf32>
    %120 = vector.broadcast %35 : vector<1x128xf32> to vector<5x128xf32>
    %121 = arith.addf %119, %120 : vector<5x128xf32>
    %122 = arith.mulf %121, %121 : vector<5x128xf32>
    %123 = arith.mulf %121, %122 : vector<5x128xf32>
    %cst_46 = arith.constant 4.471500e-02 : f32
    %124 = vector.broadcast %cst_46 : f32 to vector<5x128xf32>
    %125 = arith.mulf %124, %123 : vector<5x128xf32>
    %126 = arith.addf %121, %125 : vector<5x128xf32>
    %cst_47 = arith.constant 0.797884583 : f32
    %127 = vector.broadcast %cst_47 : f32 to vector<5x128xf32>
    %128 = arith.mulf %127, %126 : vector<5x128xf32>
    %129 = math.tanh %128 : vector<5x128xf32>
    %cst_48 = arith.constant 1.000000e+00 : f32
    %130 = vector.broadcast %cst_48 : f32 to vector<5x128xf32>
    %131 = arith.addf %130, %129 : vector<5x128xf32>
    %cst_49 = arith.constant 5.000000e-01 : f32
    %132 = vector.broadcast %cst_49 : f32 to vector<5x128xf32>
    %133 = arith.mulf %132, %131 : vector<5x128xf32>
    %134 = arith.mulf %121, %133 : vector<5x128xf32>
    %cst_50 = arith.constant dense<0.000000e+00> : vector<5x32xf32>
    %135 = tpu.matmul %134, %28, %cst_50 {dimension_numbers = #tpu.dot_dimension_numbers<[1], [1], [0], [0], [0, 0, 1, 0], [], []>} : vector<5x128xf32>, vector<32x128xf32>, vector<5x32xf32> -> vector<5x32xf32>
    %136 = vector.broadcast %36 : vector<1x32xf32> to vector<5x32xf32>
    %137 = arith.addf %135, %136 : vector<5x32xf32>
    %138 = arith.addf %98, %137 : vector<5x32xf32>
    %c1_51 = arith.constant 1 : index
    %c0_52 = arith.constant 0 : index
    %c0_53 = arith.constant 0 : index
    %139 = vector.load %arg2[%c1_51, %c0_52, %c0_53] : memref<2x32x384xf32, #tpu.memory_space<vmem>>, vector<1x32x384xf32>
    %140 = vector.shape_cast %139 : vector<1x32x384xf32> to vector<32x384xf32>
    %c1_54 = arith.constant 1 : index
    %c0_55 = arith.constant 0 : index
    %c0_56 = arith.constant 0 : index
    %141 = vector.load %arg3[%c1_54, %c0_55, %c0_56] : memref<2x8x128xf32, #tpu.memory_space<vmem>>, vector<1x8x128xf32>
    %142 = vector.shape_cast %141 : vector<1x8x128xf32> to vector<8x128xf32>
    %143 = vector.extract_strided_slice %140 {offsets = [0, 0], sizes = [32, 96], strides = [1, 1]} : vector<32x384xf32> to vector<32x96xf32>
    %144 = vector.extract_strided_slice %140 {offsets = [0, 96], sizes = [32, 32], strides = [1, 1]} : vector<32x384xf32> to vector<32x32xf32>
    %145 = vector.extract_strided_slice %140 {offsets = [0, 128], sizes = [32, 128], strides = [1, 1]} : vector<32x384xf32> to vector<32x128xf32>
    %146 = vector.extract_strided_slice %140 {offsets = [0, 256], sizes = [32, 128], strides = [1, 1]} : vector<32x384xf32> to vector<32x128xf32>
    %147 = vector.extract_strided_slice %142 {offsets = [0, 0], sizes = [1, 32], strides = [1, 1]} : vector<8x128xf32> to vector<1x32xf32>
    %148 = vector.extract_strided_slice %142 {offsets = [1, 0], sizes = [1, 32], strides = [1, 1]} : vector<8x128xf32> to vector<1x32xf32>
    %149 = vector.extract_strided_slice %142 {offsets = [2, 0], sizes = [1, 96], strides = [1, 1]} : vector<8x128xf32> to vector<1x96xf32>
    %150 = vector.extract_strided_slice %142 {offsets = [3, 0], sizes = [1, 32], strides = [1, 1]} : vector<8x128xf32> to vector<1x32xf32>
    %151 = vector.extract_strided_slice %142 {offsets = [4, 0], sizes = [1, 32], strides = [1, 1]} : vector<8x128xf32> to vector<1x32xf32>
    %152 = vector.extract_strided_slice %142 {offsets = [5, 0], sizes = [1, 32], strides = [1, 1]} : vector<8x128xf32> to vector<1x32xf32>
    %153 = vector.extract_strided_slice %142 {offsets = [6, 0], sizes = [1, 128], strides = [1, 1]} : vector<8x128xf32> to vector<1x128xf32>
    %154 = vector.extract_strided_slice %142 {offsets = [7, 0], sizes = [1, 32], strides = [1, 1]} : vector<8x128xf32> to vector<1x32xf32>
    %cst_57 = arith.constant dense<0.000000e+00> : vector<5xf32>
    %155 = vector.multi_reduction <add>, %138, %cst_57 [1] : vector<5x32xf32> to vector<5xf32>
    %156 = vector.shape_cast %155 : vector<5xf32> to vector<5x1xf32>
    %cst_58 = arith.constant 3.200000e+01 : f32
    %157 = vector.broadcast %cst_58 : f32 to vector<5x1xf32>
    %158 = arith.divf %156, %157 : vector<5x1xf32>
    %159 = vector.broadcast %158 : vector<5x1xf32> to vector<5x32xf32>
    %160 = arith.subf %138, %159 : vector<5x32xf32>
    %161 = arith.mulf %160, %160 : vector<5x32xf32>
    %cst_59 = arith.constant dense<0.000000e+00> : vector<5xf32>
    %162 = vector.multi_reduction <add>, %161, %cst_59 [1] : vector<5x32xf32> to vector<5xf32>
    %163 = vector.shape_cast %162 : vector<5xf32> to vector<5x1xf32>
    %cst_60 = arith.constant 3.200000e+01 : f32
    %164 = vector.broadcast %cst_60 : f32 to vector<5x1xf32>
    %165 = arith.divf %163, %164 : vector<5x1xf32>
    %cst_61 = arith.constant 9.99999996E-13 : f32
    %166 = vector.broadcast %cst_61 : f32 to vector<5x1xf32>
    %167 = arith.addf %165, %166 : vector<5x1xf32>
    %168 = math.rsqrt %167 : vector<5x1xf32>
    %169 = vector.broadcast %168 : vector<5x1xf32> to vector<5x32xf32>
    %170 = arith.mulf %160, %169 : vector<5x32xf32>
    %171 = vector.broadcast %147 : vector<1x32xf32> to vector<5x32xf32>
    %172 = arith.mulf %170, %171 : vector<5x32xf32>
    %173 = vector.broadcast %148 : vector<1x32xf32> to vector<5x32xf32>
    %174 = arith.addf %172, %173 : vector<5x32xf32>
    %cst_62 = arith.constant dense<0.000000e+00> : vector<5x96xf32>
    %175 = tpu.matmul %174, %143, %cst_62 {dimension_numbers = #tpu.dot_dimension_numbers<[1], [0], [0], [1], [0, 0, 1, 1], [], []>} : vector<5x32xf32>, vector<32x96xf32>, vector<5x96xf32> -> vector<5x96xf32>
    %176 = vector.broadcast %149 : vector<1x96xf32> to vector<5x96xf32>
    %177 = arith.addf %175, %176 : vector<5x96xf32>
    %178 = vector.extract_strided_slice %177 {offsets = [0, 0], sizes = [5, 16], strides = [1, 1]} : vector<5x96xf32> to vector<5x16xf32>
    %179 = vector.extract_strided_slice %177 {offsets = [0, 32], sizes = [5, 16], strides = [1, 1]} : vector<5x96xf32> to vector<5x16xf32>
    %180 = vector.extract_strided_slice %177 {offsets = [0, 64], sizes = [5, 16], strides = [1, 1]} : vector<5x96xf32> to vector<5x16xf32>
    %cst_63 = arith.constant dense<0.000000e+00> : vector<5x5xf32>
    %181 = tpu.matmul %178, %179, %cst_63 {dimension_numbers = #tpu.dot_dimension_numbers<[1], [1], [0], [0], [0, 0, 1, 0], [], []>} : vector<5x16xf32>, vector<5x16xf32>, vector<5x5xf32> -> vector<5x5xf32>
    %cst_64 = arith.constant 2.500000e-01 : f32
    %182 = vector.broadcast %cst_64 : f32 to vector<5x5xf32>
    %183 = arith.mulf %181, %182 : vector<5x5xf32>
    %cst_65 = arith.constant dense<0xFF800000> : vector<5xf32>
    %184 = vector.multi_reduction <maximumf>, %183, %cst_65 [1] : vector<5x5xf32> to vector<5xf32>
    %185 = vector.shape_cast %184 : vector<5xf32> to vector<5x1xf32>
    %186 = vector.broadcast %185 : vector<5x1xf32> to vector<5x5xf32>
    %187 = arith.subf %183, %186 : vector<5x5xf32>
    %188 = math.exp %187 : vector<5x5xf32>
    %cst_66 = arith.constant dense<0.000000e+00> : vector<5xf32>
    %189 = vector.multi_reduction <add>, %188, %cst_66 [1] : vector<5x5xf32> to vector<5xf32>
    %190 = vector.shape_cast %189 : vector<5xf32> to vector<5x1xf32>
    %191 = vector.broadcast %190 : vector<5x1xf32> to vector<5x5xf32>
    %192 = arith.divf %188, %191 : vector<5x5xf32>
    %cst_67 = arith.constant dense<0.000000e+00> : vector<5x16xf32>
    %193 = tpu.matmul %192, %180, %cst_67 {dimension_numbers = #tpu.dot_dimension_numbers<[1], [0], [0], [1], [0, 0, 1, 1], [], []>} : vector<5x5xf32>, vector<5x16xf32>, vector<5x16xf32> -> vector<5x16xf32>
    %c0_68 = arith.constant 0 : index
    %c0_69 = arith.constant 0 : index
    %194 = vector.load %arg7[%c0_68, %c0_69] : memref<5x32xf32, #tpu.memory_space<vmem>>, vector<5x16xf32>
    tpu.vector_store %arg7[%c0_68, %c0_69], %193 {strides = array<i32>} : memref<5x32xf32, #tpu.memory_space<vmem>>, vector<5x16xf32>,
    %195 = vector.extract_strided_slice %177 {offsets = [0, 16], sizes = [5, 16], strides = [1, 1]} : vector<5x96xf32> to vector<5x16xf32>
    %196 = vector.extract_strided_slice %177 {offsets = [0, 48], sizes = [5, 16], strides = [1, 1]} : vector<5x96xf32> to vector<5x16xf32>
    %197 = vector.extract_strided_slice %177 {offsets = [0, 80], sizes = [5, 16], strides = [1, 1]} : vector<5x96xf32> to vector<5x16xf32>
    %cst_70 = arith.constant dense<0.000000e+00> : vector<5x5xf32>
    %198 = tpu.matmul %195, %196, %cst_70 {dimension_numbers = #tpu.dot_dimension_numbers<[1], [1], [0], [0], [0, 0, 1, 0], [], []>} : vector<5x16xf32>, vector<5x16xf32>, vector<5x5xf32> -> vector<5x5xf32>
    %cst_71 = arith.constant 2.500000e-01 : f32
    %199 = vector.broadcast %cst_71 : f32 to vector<5x5xf32>
    %200 = arith.mulf %198, %199 : vector<5x5xf32>
    %cst_72 = arith.constant dense<0xFF800000> : vector<5xf32>
    %201 = vector.multi_reduction <maximumf>, %200, %cst_72 [1] : vector<5x5xf32> to vector<5xf32>
    %202 = vector.shape_cast %201 : vector<5xf32> to vector<5x1xf32>
    %203 = vector.broadcast %202 : vector<5x1xf32> to vector<5x5xf32>
    %204 = arith.subf %200, %203 : vector<5x5xf32>
    %205 = math.exp %204 : vector<5x5xf32>
    %cst_73 = arith.constant dense<0.000000e+00> : vector<5xf32>
    %206 = vector.multi_reduction <add>, %205, %cst_73 [1] : vector<5x5xf32> to vector<5xf32>
    %207 = vector.shape_cast %206 : vector<5xf32> to vector<5x1xf32>
    %208 = vector.broadcast %207 : vector<5x1xf32> to vector<5x5xf32>
    %209 = arith.divf %205, %208 : vector<5x5xf32>
    %cst_74 = arith.constant dense<0.000000e+00> : vector<5x16xf32>
    %210 = tpu.matmul %209, %197, %cst_74 {dimension_numbers = #tpu.dot_dimension_numbers<[1], [0], [0], [1], [0, 0, 1, 1], [], []>} : vector<5x5xf32>, vector<5x16xf32>, vector<5x16xf32> -> vector<5x16xf32>
    %c0_75 = arith.constant 0 : index
    %c16_76 = arith.constant 16 : index
    %211 = vector.load %arg7[%c0_75, %c16_76] : memref<5x32xf32, #tpu.memory_space<vmem>>, vector<5x16xf32>
    tpu.vector_store %arg7[%c0_75, %c16_76], %210 {strides = array<i32>} : memref<5x32xf32, #tpu.memory_space<vmem>>, vector<5x16xf32>,
    %c0_77 = arith.constant 0 : index
    %c0_78 = arith.constant 0 : index
    %212 = vector.load %arg7[%c0_77, %c0_78] : memref<5x32xf32, #tpu.memory_space<vmem>>, vector<5x32xf32>
    %cst_79 = arith.constant dense<0.000000e+00> : vector<5x32xf32>
    %213 = tpu.matmul %212, %144, %cst_79 {dimension_numbers = #tpu.dot_dimension_numbers<[1], [0], [0], [1], [0, 0, 1, 1], [], []>} : vector<5x32xf32>, vector<32x32xf32>, vector<5x32xf32> -> vector<5x32xf32>
    %214 = arith.addf %138, %213 : vector<5x32xf32>
    %215 = vector.broadcast %150 : vector<1x32xf32> to vector<5x32xf32>
    %216 = arith.addf %214, %215 : vector<5x32xf32>
    %cst_80 = arith.constant dense<0.000000e+00> : vector<5xf32>
    %217 = vector.multi_reduction <add>, %216, %cst_80 [1] : vector<5x32xf32> to vector<5xf32>
    %218 = vector.shape_cast %217 : vector<5xf32> to vector<5x1xf32>
    %cst_81 = arith.constant 3.200000e+01 : f32
    %219 = vector.broadcast %cst_81 : f32 to vector<5x1xf32>
    %220 = arith.divf %218, %219 : vector<5x1xf32>
    %221 = vector.broadcast %220 : vector<5x1xf32> to vector<5x32xf32>
    %222 = arith.subf %216, %221 : vector<5x32xf32>
    %223 = arith.mulf %222, %222 : vector<5x32xf32>
    %cst_82 = arith.constant dense<0.000000e+00> : vector<5xf32>
    %224 = vector.multi_reduction <add>, %223, %cst_82 [1] : vector<5x32xf32> to vector<5xf32>
    %225 = vector.shape_cast %224 : vector<5xf32> to vector<5x1xf32>
    %cst_83 = arith.constant 3.200000e+01 : f32
    %226 = vector.broadcast %cst_83 : f32 to vector<5x1xf32>
    %227 = arith.divf %225, %226 : vector<5x1xf32>
    %cst_84 = arith.constant 9.99999996E-13 : f32
    %228 = vector.broadcast %cst_84 : f32 to vector<5x1xf32>
    %229 = arith.addf %227, %228 : vector<5x1xf32>
    %230 = math.rsqrt %229 : vector<5x1xf32>
    %231 = vector.broadcast %230 : vector<5x1xf32> to vector<5x32xf32>
    %232 = arith.mulf %222, %231 : vector<5x32xf32>
    %233 = vector.broadcast %151 : vector<1x32xf32> to vector<5x32xf32>
    %234 = arith.mulf %232, %233 : vector<5x32xf32>
    %235 = vector.broadcast %152 : vector<1x32xf32> to vector<5x32xf32>
    %236 = arith.addf %234, %235 : vector<5x32xf32>
    %cst_85 = arith.constant dense<0.000000e+00> : vector<5x128xf32>
    %237 = tpu.matmul %236, %145, %cst_85 {dimension_numbers = #tpu.dot_dimension_numbers<[1], [0], [0], [1], [0, 0, 1, 1], [], []>} : vector<5x32xf32>, vector<32x128xf32>, vector<5x128xf32> -> vector<5x128xf32>
    %238 = vector.broadcast %153 : vector<1x128xf32> to vector<5x128xf32>
    %239 = arith.addf %237, %238 : vector<5x128xf32>
    %240 = arith.mulf %239, %239 : vector<5x128xf32>
    %241 = arith.mulf %239, %240 : vector<5x128xf32>
    %cst_86 = arith.constant 4.471500e-02 : f32
    %242 = vector.broadcast %cst_86 : f32 to vector<5x128xf32>
    %243 = arith.mulf %242, %241 : vector<5x128xf32>
    %244 = arith.addf %239, %243 : vector<5x128xf32>
    %cst_87 = arith.constant 0.797884583 : f32
    %245 = vector.broadcast %cst_87 : f32 to vector<5x128xf32>
    %246 = arith.mulf %245, %244 : vector<5x128xf32>
    %247 = math.tanh %246 : vector<5x128xf32>
    %cst_88 = arith.constant 1.000000e+00 : f32
    %248 = vector.broadcast %cst_88 : f32 to vector<5x128xf32>
    %249 = arith.addf %248, %247 : vector<5x128xf32>
    %cst_89 = arith.constant 5.000000e-01 : f32
    %250 = vector.broadcast %cst_89 : f32 to vector<5x128xf32>
    %251 = arith.mulf %250, %249 : vector<5x128xf32>
    %252 = arith.mulf %239, %251 : vector<5x128xf32>
    %cst_90 = arith.constant dense<0.000000e+00> : vector<5x32xf32>
    %253 = tpu.matmul %252, %146, %cst_90 {dimension_numbers = #tpu.dot_dimension_numbers<[1], [1], [0], [0], [0, 0, 1, 0], [], []>} : vector<5x128xf32>, vector<32x128xf32>, vector<5x32xf32> -> vector<5x32xf32>
    %254 = vector.broadcast %154 : vector<1x32xf32> to vector<5x32xf32>
    %255 = arith.addf %253, %254 : vector<5x32xf32>
    %256 = arith.addf %216, %255 : vector<5x32xf32>
    %cst_91 = arith.constant dense<0.000000e+00> : vector<5xf32>
    %257 = vector.multi_reduction <add>, %256, %cst_91 [1] : vector<5x32xf32> to vector<5xf32>
    %258 = vector.shape_cast %257 : vector<5xf32> to vector<5x1xf32>
    %cst_92 = arith.constant 3.200000e+01 : f32
    %259 = vector.broadcast %cst_92 : f32 to vector<5x1xf32>
    %260 = arith.divf %258, %259 : vector<5x1xf32>
    %261 = vector.broadcast %260 : vector<5x1xf32> to vector<5x32xf32>
    %262 = arith.subf %256, %261 : vector<5x32xf32>
    %263 = arith.mulf %262, %262 : vector<5x32xf32>
    %cst_93 = arith.constant dense<0.000000e+00> : vector<5xf32>
    %264 = vector.multi_reduction <add>, %263, %cst_93 [1] : vector<5x32xf32> to vector<5xf32>
    %265 = vector.shape_cast %264 : vector<5xf32> to vector<5x1xf32>
    %cst_94 = arith.constant 3.200000e+01 : f32
    %266 = vector.broadcast %cst_94 : f32 to vector<5x1xf32>
    %267 = arith.divf %265, %266 : vector<5x1xf32>
    %cst_95 = arith.constant 9.99999996E-13 : f32
    %268 = vector.broadcast %cst_95 : f32 to vector<5x1xf32>
    %269 = arith.addf %267, %268 : vector<5x1xf32>
    %270 = math.rsqrt %269 : vector<5x1xf32>
    %271 = vector.broadcast %270 : vector<5x1xf32> to vector<5x32xf32>
    %272 = arith.mulf %262, %271 : vector<5x32xf32>
    %273 = vector.broadcast %5 : vector<1x32xf32> to vector<5x32xf32>
    %274 = arith.mulf %272, %273 : vector<5x32xf32>
    %275 = vector.broadcast %6 : vector<1x32xf32> to vector<5x32xf32>
    %276 = arith.addf %274, %275 : vector<5x32xf32>
    %277 = vector.extract_strided_slice %276 {offsets = [1, 0], sizes = [4, 32], strides = [1, 1]} : vector<5x32xf32> to vector<4x32xf32>
    %cst_96 = arith.constant dense<0.000000e+00> : vector<4x32xf32>
    %278 = tpu.matmul %277, %1, %cst_96 {dimension_numbers = #tpu.dot_dimension_numbers<[1], [0], [0], [1], [0, 0, 1, 1], [], []>} : vector<4x32xf32>, vector<32x32xf32>, vector<4x32xf32> -> vector<4x32xf32>
    %279 = vector.broadcast %7 : vector<1x32xf32> to vector<4x32xf32>
    %280 = arith.addf %278, %279 : vector<4x32xf32>
    %281 = vector.extract_strided_slice %280 {offsets = [0, 0], sizes = [1, 32], strides = [1, 1]} : vector<4x32xf32> to vector<1x32xf32>
    %282 = vector.extract_strided_slice %280 {offsets = [1, 0], sizes = [1, 32], strides = [1, 1]} : vector<4x32xf32> to vector<1x32xf32>
    %283 = vector.extract_strided_slice %280 {offsets = [2, 0], sizes = [1, 32], strides = [1, 1]} : vector<4x32xf32> to vector<1x32xf32>
    %284 = vector.extract_strided_slice %280 {offsets = [3, 0], sizes = [1, 32], strides = [1, 1]} : vector<4x32xf32> to vector<1x32xf32>
    %285 = tpu.concatenate %281, %282, %283, %284 in 1 : vector<1x32xf32>, vector<1x32xf32>, vector<1x32xf32>, vector<1x32xf32> -> vector<1x128xf32>
    %c1_97 = arith.constant 1 : index
    %c0_98 = arith.constant 0 : index
    %c0_99 = arith.constant 0 : index
    %286 = vector.load %arg1[%c1_97, %c0_98, %c0_99] : memref<2x4x192xf32, #tpu.memory_space<vmem>>, vector<1x4x192xf32>
    %287 = vector.shape_cast %286 : vector<1x4x192xf32> to vector<4x192xf32>
    %cst_100 = arith.constant dense<0.000000e+00> : vector<4x32xf32>
    %288 = tpu.matmul %287, %0, %cst_100 {dimension_numbers = #tpu.dot_dimension_numbers<[1], [0], [0], [1], [0, 0, 1, 1], [], []>} : vector<4x192xf32>, vector<192x32xf32>, vector<4x32xf32> -> vector<4x32xf32>
    %289 = vector.broadcast %3 : vector<1x32xf32> to vector<4x32xf32>
    %290 = arith.addf %288, %289 : vector<4x32xf32>
    %291 = vector.extract_strided_slice %8 {offsets = [0, 0], sizes = [1, 32], strides = [1, 1]} : vector<5x32xf32> to vector<1x32xf32>
    %292 = arith.addf %4, %291 : vector<1x32xf32>
    %c0_101 = arith.constant 0 : index
    %c0_102 = arith.constant 0 : index
    %293 = vector.load %arg6[%c0_101, %c0_102] : memref<5x32xf32, #tpu.memory_space<vmem>>, vector<1x32xf32>
    tpu.vector_store %arg6[%c0_101, %c0_102], %292 {strides = array<i32>} : memref<5x32xf32, #tpu.memory_space<vmem>>, vector<1x32xf32>,
    %294 = vector.extract_strided_slice %8 {offsets = [1, 0], sizes = [4, 32], strides = [1, 1]} : vector<5x32xf32> to vector<4x32xf32>
    %295 = arith.addf %290, %294 : vector<4x32xf32>
    %c1_103 = arith.constant 1 : index
    %c0_104 = arith.constant 0 : index
    %296 = vector.load %arg6[%c1_103, %c0_104] : memref<5x32xf32, #tpu.memory_space<vmem>>, vector<4x32xf32>
    tpu.vector_store %arg6[%c1_103, %c0_104], %295 {strides = array<i32>} : memref<5x32xf32, #tpu.memory_space<vmem>>, vector<4x32xf32>,
    %c0_105 = arith.constant 0 : index
    %c0_106 = arith.constant 0 : index
    %297 = vector.load %arg6[%c0_105, %c0_106] : memref<5x32xf32, #tpu.memory_space<vmem>>, vector<5x32xf32>
    %c0_107 = arith.constant 0 : index
    %c0_108 = arith.constant 0 : index
    %c0_109 = arith.constant 0 : index
    %298 = vector.load %arg2[%c0_107, %c0_108, %c0_109] : memref<2x32x384xf32, #tpu.memory_space<vmem>>, vector<1x32x384xf32>
    %299 = vector.shape_cast %298 : vector<1x32x384xf32> to vector<32x384xf32>
    %c0_110 = arith.constant 0 : index
    %c0_111 = arith.constant 0 : index
    %c0_112 = arith.constant 0 : index
    %300 = vector.load %arg3[%c0_110, %c0_111, %c0_112] : memref<2x8x128xf32, #tpu.memory_space<vmem>>, vector<1x8x128xf32>
    %301 = vector.shape_cast %300 : vector<1x8x128xf32> to vector<8x128xf32>
    %302 = vector.extract_strided_slice %299 {offsets = [0, 0], sizes = [32, 96], strides = [1, 1]} : vector<32x384xf32> to vector<32x96xf32>
    %303 = vector.extract_strided_slice %299 {offsets = [0, 96], sizes = [32, 32], strides = [1, 1]} : vector<32x384xf32> to vector<32x32xf32>
    %304 = vector.extract_strided_slice %299 {offsets = [0, 128], sizes = [32, 128], strides = [1, 1]} : vector<32x384xf32> to vector<32x128xf32>
    %305 = vector.extract_strided_slice %299 {offsets = [0, 256], sizes = [32, 128], strides = [1, 1]} : vector<32x384xf32> to vector<32x128xf32>
    %306 = vector.extract_strided_slice %301 {offsets = [0, 0], sizes = [1, 32], strides = [1, 1]} : vector<8x128xf32> to vector<1x32xf32>
    %307 = vector.extract_strided_slice %301 {offsets = [1, 0], sizes = [1, 32], strides = [1, 1]} : vector<8x128xf32> to vector<1x32xf32>
    %308 = vector.extract_strided_slice %301 {offsets = [2, 0], sizes = [1, 96], strides = [1, 1]} : vector<8x128xf32> to vector<1x96xf32>
    %309 = vector.extract_strided_slice %301 {offsets = [3, 0], sizes = [1, 32], strides = [1, 1]} : vector<8x128xf32> to vector<1x32xf32>
    %310 = vector.extract_strided_slice %301 {offsets = [4, 0], sizes = [1, 32], strides = [1, 1]} : vector<8x128xf32> to vector<1x32xf32>
    %311 = vector.extract_strided_slice %301 {offsets = [5, 0], sizes = [1, 32], strides = [1, 1]} : vector<8x128xf32> to vector<1x32xf32>
    %312 = vector.extract_strided_slice %301 {offsets = [6, 0], sizes = [1, 128], strides = [1, 1]} : vector<8x128xf32> to vector<1x128xf32>
    %313 = vector.extract_strided_slice %301 {offsets = [7, 0], sizes = [1, 32], strides = [1, 1]} : vector<8x128xf32> to vector<1x32xf32>
    %cst_113 = arith.constant dense<0.000000e+00> : vector<5xf32>
    %314 = vector.multi_reduction <add>, %297, %cst_113 [1] : vector<5x32xf32> to vector<5xf32>
    %315 = vector.shape_cast %314 : vector<5xf32> to vector<5x1xf32>
    %cst_114 = arith.constant 3.200000e+01 : f32
    %316 = vector.broadcast %cst_114 : f32 to vector<5x1xf32>
    %317 = arith.divf %315, %316 : vector<5x1xf32>
    %318 = vector.broadcast %317 : vector<5x1xf32> to vector<5x32xf32>
    %319 = arith.subf %297, %318 : vector<5x32xf32>
    %320 = arith.mulf %319, %319 : vector<5x32xf32>
    %cst_115 = arith.constant dense<0.000000e+00> : vector<5xf32>
    %321 = vector.multi_reduction <add>, %320, %cst_115 [1] : vector<5x32xf32> to vector<5xf32>
    %322 = vector.shape_cast %321 : vector<5xf32> to vector<5x1xf32>
    %cst_116 = arith.constant 3.200000e+01 : f32
    %323 = vector.broadcast %cst_116 : f32 to vector<5x1xf32>
    %324 = arith.divf %322, %323 : vector<5x1xf32>
    %cst_117 = arith.constant 9.99999996E-13 : f32
    %325 = vector.broadcast %cst_117 : f32 to vector<5x1xf32>
    %326 = arith.addf %324, %325 : vector<5x1xf32>
    %327 = math.rsqrt %326 : vector<5x1xf32>
    %328 = vector.broadcast %327 : vector<5x1xf32> to vector<5x32xf32>
    %329 = arith.mulf %319, %328 : vector<5x32xf32>
    %330 = vector.broadcast %306 : vector<1x32xf32> to vector<5x32xf32>
    %331 = arith.mulf %329, %330 : vector<5x32xf32>
    %332 = vector.broadcast %307 : vector<1x32xf32> to vector<5x32xf32>
    %333 = arith.addf %331, %332 : vector<5x32xf32>
    %cst_118 = arith.constant dense<0.000000e+00> : vector<5x96xf32>
    %334 = tpu.matmul %333, %302, %cst_118 {dimension_numbers = #tpu.dot_dimension_numbers<[1], [0], [0], [1], [0, 0, 1, 1], [], []>} : vector<5x32xf32>, vector<32x96xf32>, vector<5x96xf32> -> vector<5x96xf32>
    %335 = vector.broadcast %308 : vector<1x96xf32> to vector<5x96xf32>
    %336 = arith.addf %334, %335 : vector<5x96xf32>
    %337 = vector.extract_strided_slice %336 {offsets = [0, 0], sizes = [5, 16], strides = [1, 1]} : vector<5x96xf32> to vector<5x16xf32>
    %338 = vector.extract_strided_slice %336 {offsets = [0, 32], sizes = [5, 16], strides = [1, 1]} : vector<5x96xf32> to vector<5x16xf32>
    %339 = vector.extract_strided_slice %336 {offsets = [0, 64], sizes = [5, 16], strides = [1, 1]} : vector<5x96xf32> to vector<5x16xf32>
    %cst_119 = arith.constant dense<0.000000e+00> : vector<5x5xf32>
    %340 = tpu.matmul %337, %338, %cst_119 {dimension_numbers = #tpu.dot_dimension_numbers<[1], [1], [0], [0], [0, 0, 1, 0], [], []>} : vector<5x16xf32>, vector<5x16xf32>, vector<5x5xf32> -> vector<5x5xf32>
    %cst_120 = arith.constant 2.500000e-01 : f32
    %341 = vector.broadcast %cst_120 : f32 to vector<5x5xf32>
    %342 = arith.mulf %340, %341 : vector<5x5xf32>
    %cst_121 = arith.constant dense<0xFF800000> : vector<5xf32>
    %343 = vector.multi_reduction <maximumf>, %342, %cst_121 [1] : vector<5x5xf32> to vector<5xf32>
    %344 = vector.shape_cast %343 : vector<5xf32> to vector<5x1xf32>
    %345 = vector.broadcast %344 : vector<5x1xf32> to vector<5x5xf32>
    %346 = arith.subf %342, %345 : vector<5x5xf32>
    %347 = math.exp %346 : vector<5x5xf32>
    %cst_122 = arith.constant dense<0.000000e+00> : vector<5xf32>
    %348 = vector.multi_reduction <add>, %347, %cst_122 [1] : vector<5x5xf32> to vector<5xf32>
    %349 = vector.shape_cast %348 : vector<5xf32> to vector<5x1xf32>
    %350 = vector.broadcast %349 : vector<5x1xf32> to vector<5x5xf32>
    %351 = arith.divf %347, %350 : vector<5x5xf32>
    %cst_123 = arith.constant dense<0.000000e+00> : vector<5x16xf32>
    %352 = tpu.matmul %351, %339, %cst_123 {dimension_numbers = #tpu.dot_dimension_numbers<[1], [0], [0], [1], [0, 0, 1, 1], [], []>} : vector<5x5xf32>, vector<5x16xf32>, vector<5x16xf32> -> vector<5x16xf32>
    %c0_124 = arith.constant 0 : index
    %c0_125 = arith.constant 0 : index
    %353 = vector.load %arg7[%c0_124, %c0_125] : memref<5x32xf32, #tpu.memory_space<vmem>>, vector<5x16xf32>
    tpu.vector_store %arg7[%c0_124, %c0_125], %352 {strides = array<i32>} : memref<5x32xf32, #tpu.memory_space<vmem>>, vector<5x16xf32>,
    %354 = vector.extract_strided_slice %336 {offsets = [0, 16], sizes = [5, 16], strides = [1, 1]} : vector<5x96xf32> to vector<5x16xf32>
    %355 = vector.extract_strided_slice %336 {offsets = [0, 48], sizes = [5, 16], strides = [1, 1]} : vector<5x96xf32> to vector<5x16xf32>
    %356 = vector.extract_strided_slice %336 {offsets = [0, 80], sizes = [5, 16], strides = [1, 1]} : vector<5x96xf32> to vector<5x16xf32>
    %cst_126 = arith.constant dense<0.000000e+00> : vector<5x5xf32>
    %357 = tpu.matmul %354, %355, %cst_126 {dimension_numbers = #tpu.dot_dimension_numbers<[1], [1], [0], [0], [0, 0, 1, 0], [], []>} : vector<5x16xf32>, vector<5x16xf32>, vector<5x5xf32> -> vector<5x5xf32>
    %cst_127 = arith.constant 2.500000e-01 : f32
    %358 = vector.broadcast %cst_127 : f32 to vector<5x5xf32>
    %359 = arith.mulf %357, %358 : vector<5x5xf32>
    %cst_128 = arith.constant dense<0xFF800000> : vector<5xf32>
    %360 = vector.multi_reduction <maximumf>, %359, %cst_128 [1] : vector<5x5xf32> to vector<5xf32>
    %361 = vector.shape_cast %360 : vector<5xf32> to vector<5x1xf32>
    %362 = vector.broadcast %361 : vector<5x1xf32> to vector<5x5xf32>
    %363 = arith.subf %359, %362 : vector<5x5xf32>
    %364 = math.exp %363 : vector<5x5xf32>
    %cst_129 = arith.constant dense<0.000000e+00> : vector<5xf32>
    %365 = vector.multi_reduction <add>, %364, %cst_129 [1] : vector<5x5xf32> to vector<5xf32>
    %366 = vector.shape_cast %365 : vector<5xf32> to vector<5x1xf32>
    %367 = vector.broadcast %366 : vector<5x1xf32> to vector<5x5xf32>
    %368 = arith.divf %364, %367 : vector<5x5xf32>
    %cst_130 = arith.constant dense<0.000000e+00> : vector<5x16xf32>
    %369 = tpu.matmul %368, %356, %cst_130 {dimension_numbers = #tpu.dot_dimension_numbers<[1], [0], [0], [1], [0, 0, 1, 1], [], []>} : vector<5x5xf32>, vector<5x16xf32>, vector<5x16xf32> -> vector<5x16xf32>
    %c0_131 = arith.constant 0 : index
    %c16_132 = arith.constant 16 : index
    %370 = vector.load %arg7[%c0_131, %c16_132] : memref<5x32xf32, #tpu.memory_space<vmem>>, vector<5x16xf32>
    tpu.vector_store %arg7[%c0_131, %c16_132], %369 {strides = array<i32>} : memref<5x32xf32, #tpu.memory_space<vmem>>, vector<5x16xf32>,
    %c0_133 = arith.constant 0 : index
    %c0_134 = arith.constant 0 : index
    %371 = vector.load %arg7[%c0_133, %c0_134] : memref<5x32xf32, #tpu.memory_space<vmem>>, vector<5x32xf32>
    %cst_135 = arith.constant dense<0.000000e+00> : vector<5x32xf32>
    %372 = tpu.matmul %371, %303, %cst_135 {dimension_numbers = #tpu.dot_dimension_numbers<[1], [0], [0], [1], [0, 0, 1, 1], [], []>} : vector<5x32xf32>, vector<32x32xf32>, vector<5x32xf32> -> vector<5x32xf32>
    %373 = arith.addf %297, %372 : vector<5x32xf32>
    %374 = vector.broadcast %309 : vector<1x32xf32> to vector<5x32xf32>
    %375 = arith.addf %373, %374 : vector<5x32xf32>
    %cst_136 = arith.constant dense<0.000000e+00> : vector<5xf32>
    %376 = vector.multi_reduction <add>, %375, %cst_136 [1] : vector<5x32xf32> to vector<5xf32>
    %377 = vector.shape_cast %376 : vector<5xf32> to vector<5x1xf32>
    %cst_137 = arith.constant 3.200000e+01 : f32
    %378 = vector.broadcast %cst_137 : f32 to vector<5x1xf32>
    %379 = arith.divf %377, %378 : vector<5x1xf32>
    %380 = vector.broadcast %379 : vector<5x1xf32> to vector<5x32xf32>
    %381 = arith.subf %375, %380 : vector<5x32xf32>
    %382 = arith.mulf %381, %381 : vector<5x32xf32>
    %cst_138 = arith.constant dense<0.000000e+00> : vector<5xf32>
    %383 = vector.multi_reduction <add>, %382, %cst_138 [1] : vector<5x32xf32> to vector<5xf32>
    %384 = vector.shape_cast %383 : vector<5xf32> to vector<5x1xf32>
    %cst_139 = arith.constant 3.200000e+01 : f32
    %385 = vector.broadcast %cst_139 : f32 to vector<5x1xf32>
    %386 = arith.divf %384, %385 : vector<5x1xf32>
    %cst_140 = arith.constant 9.99999996E-13 : f32
    %387 = vector.broadcast %cst_140 : f32 to vector<5x1xf32>
    %388 = arith.addf %386, %387 : vector<5x1xf32>
    %389 = math.rsqrt %388 : vector<5x1xf32>
    %390 = vector.broadcast %389 : vector<5x1xf32> to vector<5x32xf32>
    %391 = arith.mulf %381, %390 : vector<5x32xf32>
    %392 = vector.broadcast %310 : vector<1x32xf32> to vector<5x32xf32>
    %393 = arith.mulf %391, %392 : vector<5x32xf32>
    %394 = vector.broadcast %311 : vector<1x32xf32> to vector<5x32xf32>
    %395 = arith.addf %393, %394 : vector<5x32xf32>
    %cst_141 = arith.constant dense<0.000000e+00> : vector<5x128xf32>
    %396 = tpu.matmul %395, %304, %cst_141 {dimension_numbers = #tpu.dot_dimension_numbers<[1], [0], [0], [1], [0, 0, 1, 1], [], []>} : vector<5x32xf32>, vector<32x128xf32>, vector<5x128xf32> -> vector<5x128xf32>
    %397 = vector.broadcast %312 : vector<1x128xf32> to vector<5x128xf32>
    %398 = arith.addf %396, %397 : vector<5x128xf32>
    %399 = arith.mulf %398, %398 : vector<5x128xf32>
    %400 = arith.mulf %398, %399 : vector<5x128xf32>
    %cst_142 = arith.constant 4.471500e-02 : f32
    %401 = vector.broadcast %cst_142 : f32 to vector<5x128xf32>
    %402 = arith.mulf %401, %400 : vector<5x128xf32>
    %403 = arith.addf %398, %402 : vector<5x128xf32>
    %cst_143 = arith.constant 0.797884583 : f32
    %404 = vector.broadcast %cst_143 : f32 to vector<5x128xf32>
    %405 = arith.mulf %404, %403 : vector<5x128xf32>
    %406 = math.tanh %405 : vector<5x128xf32>
    %cst_144 = arith.constant 1.000000e+00 : f32
    %407 = vector.broadcast %cst_144 : f32 to vector<5x128xf32>
    %408 = arith.addf %407, %406 : vector<5x128xf32>
    %cst_145 = arith.constant 5.000000e-01 : f32
    %409 = vector.broadcast %cst_145 : f32 to vector<5x128xf32>
    %410 = arith.mulf %409, %408 : vector<5x128xf32>
    %411 = arith.mulf %398, %410 : vector<5x128xf32>
    %cst_146 = arith.constant dense<0.000000e+00> : vector<5x32xf32>
    %412 = tpu.matmul %411, %305, %cst_146 {dimension_numbers = #tpu.dot_dimension_numbers<[1], [1], [0], [0], [0, 0, 1, 0], [], []>} : vector<5x128xf32>, vector<32x128xf32>, vector<5x32xf32> -> vector<5x32xf32>
    %413 = vector.broadcast %313 : vector<1x32xf32> to vector<5x32xf32>
    %414 = arith.addf %412, %413 : vector<5x32xf32>
    %415 = arith.addf %375, %414 : vector<5x32xf32>
    %c1_147 = arith.constant 1 : index
    %c0_148 = arith.constant 0 : index
    %c0_149 = arith.constant 0 : index
    %416 = vector.load %arg2[%c1_147, %c0_148, %c0_149] : memref<2x32x384xf32, #tpu.memory_space<vmem>>, vector<1x32x384xf32>
    %417 = vector.shape_cast %416 : vector<1x32x384xf32> to vector<32x384xf32>
    %c1_150 = arith.constant 1 : index
    %c0_151 = arith.constant 0 : index
    %c0_152 = arith.constant 0 : index
    %418 = vector.load %arg3[%c1_150, %c0_151, %c0_152] : memref<2x8x128xf32, #tpu.memory_space<vmem>>, vector<1x8x128xf32>
    %419 = vector.shape_cast %418 : vector<1x8x128xf32> to vector<8x128xf32>
    %420 = vector.extract_strided_slice %417 {offsets = [0, 0], sizes = [32, 96], strides = [1, 1]} : vector<32x384xf32> to vector<32x96xf32>
    %421 = vector.extract_strided_slice %417 {offsets = [0, 96], sizes = [32, 32], strides = [1, 1]} : vector<32x384xf32> to vector<32x32xf32>
    %422 = vector.extract_strided_slice %417 {offsets = [0, 128], sizes = [32, 128], strides = [1, 1]} : vector<32x384xf32> to vector<32x128xf32>
    %423 = vector.extract_strided_slice %417 {offsets = [0, 256], sizes = [32, 128], strides = [1, 1]} : vector<32x384xf32> to vector<32x128xf32>
    %424 = vector.extract_strided_slice %419 {offsets = [0, 0], sizes = [1, 32], strides = [1, 1]} : vector<8x128xf32> to vector<1x32xf32>
    %425 = vector.extract_strided_slice %419 {offsets = [1, 0], sizes = [1, 32], strides = [1, 1]} : vector<8x128xf32> to vector<1x32xf32>
    %426 = vector.extract_strided_slice %419 {offsets = [2, 0], sizes = [1, 96], strides = [1, 1]} : vector<8x128xf32> to vector<1x96xf32>
    %427 = vector.extract_strided_slice %419 {offsets = [3, 0], sizes = [1, 32], strides = [1, 1]} : vector<8x128xf32> to vector<1x32xf32>
    %428 = vector.extract_strided_slice %419 {offsets = [4, 0], sizes = [1, 32], strides = [1, 1]} : vector<8x128xf32> to vector<1x32xf32>
    %429 = vector.extract_strided_slice %419 {offsets = [5, 0], sizes = [1, 32], strides = [1, 1]} : vector<8x128xf32> to vector<1x32xf32>
    %430 = vector.extract_strided_slice %419 {offsets = [6, 0], sizes = [1, 128], strides = [1, 1]} : vector<8x128xf32> to vector<1x128xf32>
    %431 = vector.extract_strided_slice %419 {offsets = [7, 0], sizes = [1, 32], strides = [1, 1]} : vector<8x128xf32> to vector<1x32xf32>
    %cst_153 = arith.constant dense<0.000000e+00> : vector<5xf32>
    %432 = vector.multi_reduction <add>, %415, %cst_153 [1] : vector<5x32xf32> to vector<5xf32>
    %433 = vector.shape_cast %432 : vector<5xf32> to vector<5x1xf32>
    %cst_154 = arith.constant 3.200000e+01 : f32
    %434 = vector.broadcast %cst_154 : f32 to vector<5x1xf32>
    %435 = arith.divf %433, %434 : vector<5x1xf32>
    %436 = vector.broadcast %435 : vector<5x1xf32> to vector<5x32xf32>
    %437 = arith.subf %415, %436 : vector<5x32xf32>
    %438 = arith.mulf %437, %437 : vector<5x32xf32>
    %cst_155 = arith.constant dense<0.000000e+00> : vector<5xf32>
    %439 = vector.multi_reduction <add>, %438, %cst_155 [1] : vector<5x32xf32> to vector<5xf32>
    %440 = vector.shape_cast %439 : vector<5xf32> to vector<5x1xf32>
    %cst_156 = arith.constant 3.200000e+01 : f32
    %441 = vector.broadcast %cst_156 : f32 to vector<5x1xf32>
    %442 = arith.divf %440, %441 : vector<5x1xf32>
    %cst_157 = arith.constant 9.99999996E-13 : f32
    %443 = vector.broadcast %cst_157 : f32 to vector<5x1xf32>
    %444 = arith.addf %442, %443 : vector<5x1xf32>
    %445 = math.rsqrt %444 : vector<5x1xf32>
    %446 = vector.broadcast %445 : vector<5x1xf32> to vector<5x32xf32>
    %447 = arith.mulf %437, %446 : vector<5x32xf32>
    %448 = vector.broadcast %424 : vector<1x32xf32> to vector<5x32xf32>
    %449 = arith.mulf %447, %448 : vector<5x32xf32>
    %450 = vector.broadcast %425 : vector<1x32xf32> to vector<5x32xf32>
    %451 = arith.addf %449, %450 : vector<5x32xf32>
    %cst_158 = arith.constant dense<0.000000e+00> : vector<5x96xf32>
    %452 = tpu.matmul %451, %420, %cst_158 {dimension_numbers = #tpu.dot_dimension_numbers<[1], [0], [0], [1], [0, 0, 1, 1], [], []>} : vector<5x32xf32>, vector<32x96xf32>, vector<5x96xf32> -> vector<5x96xf32>
    %453 = vector.broadcast %426 : vector<1x96xf32> to vector<5x96xf32>
    %454 = arith.addf %452, %453 : vector<5x96xf32>
    %455 = vector.extract_strided_slice %454 {offsets = [0, 0], sizes = [5, 16], strides = [1, 1]} : vector<5x96xf32> to vector<5x16xf32>
    %456 = vector.extract_strided_slice %454 {offsets = [0, 32], sizes = [5, 16], strides = [1, 1]} : vector<5x96xf32> to vector<5x16xf32>
    %457 = vector.extract_strided_slice %454 {offsets = [0, 64], sizes = [5, 16], strides = [1, 1]} : vector<5x96xf32> to vector<5x16xf32>
    %cst_159 = arith.constant dense<0.000000e+00> : vector<5x5xf32>
    %458 = tpu.matmul %455, %456, %cst_159 {dimension_numbers = #tpu.dot_dimension_numbers<[1], [1], [0], [0], [0, 0, 1, 0], [], []>} : vector<5x16xf32>, vector<5x16xf32>, vector<5x5xf32> -> vector<5x5xf32>
    %cst_160 = arith.constant 2.500000e-01 : f32
    %459 = vector.broadcast %cst_160 : f32 to vector<5x5xf32>
    %460 = arith.mulf %458, %459 : vector<5x5xf32>
    %cst_161 = arith.constant dense<0xFF800000> : vector<5xf32>
    %461 = vector.multi_reduction <maximumf>, %460, %cst_161 [1] : vector<5x5xf32> to vector<5xf32>
    %462 = vector.shape_cast %461 : vector<5xf32> to vector<5x1xf32>
    %463 = vector.broadcast %462 : vector<5x1xf32> to vector<5x5xf32>
    %464 = arith.subf %460, %463 : vector<5x5xf32>
    %465 = math.exp %464 : vector<5x5xf32>
    %cst_162 = arith.constant dense<0.000000e+00> : vector<5xf32>
    %466 = vector.multi_reduction <add>, %465, %cst_162 [1] : vector<5x5xf32> to vector<5xf32>
    %467 = vector.shape_cast %466 : vector<5xf32> to vector<5x1xf32>
    %468 = vector.broadcast %467 : vector<5x1xf32> to vector<5x5xf32>
    %469 = arith.divf %465, %468 : vector<5x5xf32>
    %cst_163 = arith.constant dense<0.000000e+00> : vector<5x16xf32>
    %470 = tpu.matmul %469, %457, %cst_163 {dimension_numbers = #tpu.dot_dimension_numbers<[1], [0], [0], [1], [0, 0, 1, 1], [], []>} : vector<5x5xf32>, vector<5x16xf32>, vector<5x16xf32> -> vector<5x16xf32>
    %c0_164 = arith.constant 0 : index
    %c0_165 = arith.constant 0 : index
    %471 = vector.load %arg7[%c0_164, %c0_165] : memref<5x32xf32, #tpu.memory_space<vmem>>, vector<5x16xf32>
    tpu.vector_store %arg7[%c0_164, %c0_165], %470 {strides = array<i32>} : memref<5x32xf32, #tpu.memory_space<vmem>>, vector<5x16xf32>,
    %472 = vector.extract_strided_slice %454 {offsets = [0, 16], sizes = [5, 16], strides = [1, 1]} : vector<5x96xf32> to vector<5x16xf32>
    %473 = vector.extract_strided_slice %454 {offsets = [0, 48], sizes = [5, 16], strides = [1, 1]} : vector<5x96xf32> to vector<5x16xf32>
    %474 = vector.extract_strided_slice %454 {offsets = [0, 80], sizes = [5, 16], strides = [1, 1]} : vector<5x96xf32> to vector<5x16xf32>
    %cst_166 = arith.constant dense<0.000000e+00> : vector<5x5xf32>
    %475 = tpu.matmul %472, %473, %cst_166 {dimension_numbers = #tpu.dot_dimension_numbers<[1], [1], [0], [0], [0, 0, 1, 0], [], []>} : vector<5x16xf32>, vector<5x16xf32>, vector<5x5xf32> -> vector<5x5xf32>
    %cst_167 = arith.constant 2.500000e-01 : f32
    %476 = vector.broadcast %cst_167 : f32 to vector<5x5xf32>
    %477 = arith.mulf %475, %476 : vector<5x5xf32>
    %cst_168 = arith.constant dense<0xFF800000> : vector<5xf32>
    %478 = vector.multi_reduction <maximumf>, %477, %cst_168 [1] : vector<5x5xf32> to vector<5xf32>
    %479 = vector.shape_cast %478 : vector<5xf32> to vector<5x1xf32>
    %480 = vector.broadcast %479 : vector<5x1xf32> to vector<5x5xf32>
    %481 = arith.subf %477, %480 : vector<5x5xf32>
    %482 = math.exp %481 : vector<5x5xf32>
    %cst_169 = arith.constant dense<0.000000e+00> : vector<5xf32>
    %483 = vector.multi_reduction <add>, %482, %cst_169 [1] : vector<5x5xf32> to vector<5xf32>
    %484 = vector.shape_cast %483 : vector<5xf32> to vector<5x1xf32>
    %485 = vector.broadcast %484 : vector<5x1xf32> to vector<5x5xf32>
    %486 = arith.divf %482, %485 : vector<5x5xf32>
    %cst_170 = arith.constant dense<0.000000e+00> : vector<5x16xf32>
    %487 = tpu.matmul %486, %474, %cst_170 {dimension_numbers = #tpu.dot_dimension_numbers<[1], [0], [0], [1], [0, 0, 1, 1], [], []>} : vector<5x5xf32>, vector<5x16xf32>, vector<5x16xf32> -> vector<5x16xf32>
    %c0_171 = arith.constant 0 : index
    %c16_172 = arith.constant 16 : index
    %488 = vector.load %arg7[%c0_171, %c16_172] : memref<5x32xf32, #tpu.memory_space<vmem>>, vector<5x16xf32>
    tpu.vector_store %arg7[%c0_171, %c16_172], %487 {strides = array<i32>} : memref<5x32xf32, #tpu.memory_space<vmem>>, vector<5x16xf32>,
    %c0_173 = arith.constant 0 : index
    %c0_174 = arith.constant 0 : index
    %489 = vector.load %arg7[%c0_173, %c0_174] : memref<5x32xf32, #tpu.memory_space<vmem>>, vector<5x32xf32>
    %cst_175 = arith.constant dense<0.000000e+00> : vector<5x32xf32>
    %490 = tpu.matmul %489, %421, %cst_175 {dimension_numbers = #tpu.dot_dimension_numbers<[1], [0], [0], [1], [0, 0, 1, 1], [], []>} : vector<5x32xf32>, vector<32x32xf32>, vector<5x32xf32> -> vector<5x32xf32>
    %491 = arith.addf %415, %490 : vector<5x32xf32>
    %492 = vector.broadcast %427 : vector<1x32xf32> to vector<5x32xf32>
    %493 = arith.addf %491, %492 : vector<5x32xf32>
    %cst_176 = arith.constant dense<0.000000e+00> : vector<5xf32>
    %494 = vector.multi_reduction <add>, %493, %cst_176 [1] : vector<5x32xf32> to vector<5xf32>
    %495 = vector.shape_cast %494 : vector<5xf32> to vector<5x1xf32>
    %cst_177 = arith.constant 3.200000e+01 : f32
    %496 = vector.broadcast %cst_177 : f32 to vector<5x1xf32>
    %497 = arith.divf %495, %496 : vector<5x1xf32>
    %498 = vector.broadcast %497 : vector<5x1xf32> to vector<5x32xf32>
    %499 = arith.subf %493, %498 : vector<5x32xf32>
    %500 = arith.mulf %499, %499 : vector<5x32xf32>
    %cst_178 = arith.constant dense<0.000000e+00> : vector<5xf32>
    %501 = vector.multi_reduction <add>, %500, %cst_178 [1] : vector<5x32xf32> to vector<5xf32>
    %502 = vector.shape_cast %501 : vector<5xf32> to vector<5x1xf32>
    %cst_179 = arith.constant 3.200000e+01 : f32
    %503 = vector.broadcast %cst_179 : f32 to vector<5x1xf32>
    %504 = arith.divf %502, %503 : vector<5x1xf32>
    %cst_180 = arith.constant 9.99999996E-13 : f32
    %505 = vector.broadcast %cst_180 : f32 to vector<5x1xf32>
    %506 = arith.addf %504, %505 : vector<5x1xf32>
    %507 = math.rsqrt %506 : vector<5x1xf32>
    %508 = vector.broadcast %507 : vector<5x1xf32> to vector<5x32xf32>
    %509 = arith.mulf %499, %508 : vector<5x32xf32>
    %510 = vector.broadcast %428 : vector<1x32xf32> to vector<5x32xf32>
    %511 = arith.mulf %509, %510 : vector<5x32xf32>
    %512 = vector.broadcast %429 : vector<1x32xf32> to vector<5x32xf32>
    %513 = arith.addf %511, %512 : vector<5x32xf32>
    %cst_181 = arith.constant dense<0.000000e+00> : vector<5x128xf32>
    %514 = tpu.matmul %513, %422, %cst_181 {dimension_numbers = #tpu.dot_dimension_numbers<[1], [0], [0], [1], [0, 0, 1, 1], [], []>} : vector<5x32xf32>, vector<32x128xf32>, vector<5x128xf32> -> vector<5x128xf32>
    %515 = vector.broadcast %430 : vector<1x128xf32> to vector<5x128xf32>
    %516 = arith.addf %514, %515 : vector<5x128xf32>
    %517 = arith.mulf %516, %516 : vector<5x128xf32>
    %518 = arith.mulf %516, %517 : vector<5x128xf32>
    %cst_182 = arith.constant 4.471500e-02 : f32
    %519 = vector.broadcast %cst_182 : f32 to vector<5x128xf32>
    %520 = arith.mulf %519, %518 : vector<5x128xf32>
    %521 = arith.addf %516, %520 : vector<5x128xf32>
    %cst_183 = arith.constant 0.797884583 : f32
    %522 = vector.broadcast %cst_183 : f32 to vector<5x128xf32>
    %523 = arith.mulf %522, %521 : vector<5x128xf32>
    %524 = math.tanh %523 : vector<5x128xf32>
    %cst_184 = arith.constant 1.000000e+00 : f32
    %525 = vector.broadcast %cst_184 : f32 to vector<5x128xf32>
    %526 = arith.addf %525, %524 : vector<5x128xf32>
    %cst_185 = arith.constant 5.000000e-01 : f32
    %527 = vector.broadcast %cst_185 : f32 to vector<5x128xf32>
    %528 = arith.mulf %527, %526 : vector<5x128xf32>
    %529 = arith.mulf %516, %528 : vector<5x128xf32>
    %cst_186 = arith.constant dense<0.000000e+00> : vector<5x32xf32>
    %530 = tpu.matmul %529, %423, %cst_186 {dimension_numbers = #tpu.dot_dimension_numbers<[1], [1], [0], [0], [0, 0, 1, 0], [], []>} : vector<5x128xf32>, vector<32x128xf32>, vector<5x32xf32> -> vector<5x32xf32>
    %531 = vector.broadcast %431 : vector<1x32xf32> to vector<5x32xf32>
    %532 = arith.addf %530, %531 : vector<5x32xf32>
    %533 = arith.addf %493, %532 : vector<5x32xf32>
    %cst_187 = arith.constant dense<0.000000e+00> : vector<5xf32>
    %534 = vector.multi_reduction <add>, %533, %cst_187 [1] : vector<5x32xf32> to vector<5xf32>
    %535 = vector.shape_cast %534 : vector<5xf32> to vector<5x1xf32>
    %cst_188 = arith.constant 3.200000e+01 : f32
    %536 = vector.broadcast %cst_188 : f32 to vector<5x1xf32>
    %537 = arith.divf %535, %536 : vector<5x1xf32>
    %538 = vector.broadcast %537 : vector<5x1xf32> to vector<5x32xf32>
    %539 = arith.subf %533, %538 : vector<5x32xf32>
    %540 = arith.mulf %539, %539 : vector<5x32xf32>
    %cst_189 = arith.constant dense<0.000000e+00> : vector<5xf32>
    %541 = vector.multi_reduction <add>, %540, %cst_189 [1] : vector<5x32xf32> to vector<5xf32>
    %542 = vector.shape_cast %541 : vector<5xf32> to vector<5x1xf32>
    %cst_190 = arith.constant 3.200000e+01 : f32
    %543 = vector.broadcast %cst_190 : f32 to vector<5x1xf32>
    %544 = arith.divf %542, %543 : vector<5x1xf32>
    %cst_191 = arith.constant 9.99999996E-13 : f32
    %545 = vector.broadcast %cst_191 : f32 to vector<5x1xf32>
    %546 = arith.addf %544, %545 : vector<5x1xf32>
    %547 = math.rsqrt %546 : vector<5x1xf32>
    %548 = vector.broadcast %547 : vector<5x1xf32> to vector<5x32xf32>
    %549 = arith.mulf %539, %548 : vector<5x32xf32>
    %550 = vector.broadcast %5 : vector<1x32xf32> to vector<5x32xf32>
    %551 = arith.mulf %549, %550 : vector<5x32xf32>
    %552 = vector.broadcast %6 : vector<1x32xf32> to vector<5x32xf32>
    %553 = arith.addf %551, %552 : vector<5x32xf32>
    %554 = vector.extract_strided_slice %553 {offsets = [1, 0], sizes = [4, 32], strides = [1, 1]} : vector<5x32xf32> to vector<4x32xf32>
    %cst_192 = arith.constant dense<0.000000e+00> : vector<4x32xf32>
    %555 = tpu.matmul %554, %1, %cst_192 {dimension_numbers = #tpu.dot_dimension_numbers<[1], [0], [0], [1], [0, 0, 1, 1], [], []>} : vector<4x32xf32>, vector<32x32xf32>, vector<4x32xf32> -> vector<4x32xf32>
    %556 = vector.broadcast %7 : vector<1x32xf32> to vector<4x32xf32>
    %557 = arith.addf %555, %556 : vector<4x32xf32>
    %558 = vector.extract_strided_slice %557 {offsets = [0, 0], sizes = [1, 32], strides = [1, 1]} : vector<4x32xf32> to vector<1x32xf32>
    %559 = vector.extract_strided_slice %557 {offsets = [1, 0], sizes = [1, 32], strides = [1, 1]} : vector<4x32xf32> to vector<1x32xf32>
    %560 = vector.extract_strided_slice %557 {offsets = [2, 0], sizes = [1, 32], strides = [1, 1]} : vector<4x32xf32> to vector<1x32xf32>
    %561 = vector.extract_strided_slice %557 {offsets = [3, 0], sizes = [1, 32], strides = [1, 1]} : vector<4x32xf32> to vector<1x32xf32>
    %562 = tpu.concatenate %558, %559, %560, %561 in 1 : vector<1x32xf32>, vector<1x32xf32>, vector<1x32xf32>, vector<1x32xf32> -> vector<1x128xf32>
    %563 = tpu.concatenate %285, %562 in 0 : vector<1x128xf32>, vector<1x128xf32> -> vector<2x128xf32>
    %c0_193 = arith.constant 0 : index
    %c0_194 = arith.constant 0 : index
    %564 = vector.load %arg5[%c0_193, %c0_194] : memref<2x128xf32, #tpu.memory_space<vmem>>, vector<2x128xf32>
    tpu.vector_store %arg5[%c0_193, %c0_194], %563 {strides = array<i32>} : memref<2x128xf32, #tpu.memory_space<vmem>>, vector<2x128xf32>,
    return
  }
  func.func @transform_0(%arg0: i32) -> (i32, i32, i32) {
    %c0_i32 = arith.constant 0 : i32
    %c0_i32_0 = arith.constant 0 : i32
    %c0_i32_1 = arith.constant 0 : i32
    %c0_i32_2 = arith.constant 0 : i32
    return %c0_i32, %c0_i32_0, %c0_i32_1 : i32, i32, i32
  }
  func.func @transform_1(%arg0: i32) -> (i32, i32, i32) {
    %c0_i32 = arith.constant 0 : i32
    %c0_i32_0 = arith.constant 0 : i32
    %c0_i32_1 = arith.constant 0 : i32
    %c0_i32_2 = arith.constant 0 : i32
    return %c0_i32, %c0_i32_0, %c0_i32_1 : i32, i32, i32
  }
  func.func @transform_2(%arg0: i32) -> (i32, i32, i32) {
    %c0_i32 = arith.constant 0 : i32
    %c0_i32_0 = arith.constant 0 : i32
    %c0_i32_1 = arith.constant 0 : i32
    %c0_i32_2 = arith.constant 0 : i32
    return %c0_i32, %c0_i32_0, %c0_i32_1 : i32, i32, i32
  }
  func.func @transform_3(%arg0: i32) -> (i32, i32) {
    %c0_i32 = arith.constant 0 : i32
    %c0_i32_0 = arith.constant 0 : i32
    %c0_i32_1 = arith.constant 0 : i32
    return %c0_i32, %c0_i32_0 : i32, i32
  }
  func.func @transform_4(%arg0: i32) -> (i32, i32) {
    %c0_i32 = arith.constant 0 : i32
    %c0_i32_0 = arith.constant 0 : i32
    %c0_i32_1 = arith.constant 0 : i32
    return %c0_i32, %c0_i32_0 : i32, i32
  }
}

</mosaic_0001>

<llo_original>
// kernel: tpu_custom_call.1
$region0: #{tpu_custom_call.1}
  #allocation0 [shape = 'u32[]', space=smem, size = 0x4, offset = 0x4, fixed_abs, tag = 'smem constant byte address 0x4 - core index']
  #allocation1 [shape = 'u32[72,128]{1,0:T(1,128)}', space=vmem, size = 0x9000, scoped, tag = 'internal scratch']
  #allocation2 [shape = 'f32[5,32]{1,0:T(8,128)}', space=vmem, size = 0x1000, scoped, tag = 'scratch operand']
  #allocation3 [shape = 'f32[5,32]{1,0:T(8,128)}', space=vmem, size = 0x1000, scoped, tag = 'scratch operand']
  %s0 = inlined_call_operand.vmem [shape: f32[2,4,192], index: 0, kind: input, shape index: {}]
  %s1 = inlined_call_operand.vmem [shape: f32[2,32,384], index: 1, kind: input, shape index: {}]
  %s2 = inlined_call_operand.vmem [shape: f32[2,8,128], index: 2, kind: input, shape index: {}]
  %s3 = inlined_call_operand.vmem [shape: f32[240,32], index: 3, kind: input, shape index: {}]
  %s4 = inlined_call_operand.hbm [shape: f32[2,128], index: 4, kind: output, shape index: {}]
  %s5 = sld [smem:[#allocation0]]
  $region26: #{tpu_custom_call.1} parent=0
    _
  %s7 = ssub.s32 1, %s5
  %s8 = scalar_select 0, %s7, %s5
  $region1: #{tpu_custom_call.1} parent=0
    #allocation4 [shape = 'u8[1024]{0}', space=vmem, size = 0x400, scoped, tag = 'output window, operand 0, single buffered']
    #allocation5 [shape = 's32[1]{0}', space=sflag, size = 0x4, scoped, tag = 'scoped memory for tpu_custom_call.1']
    %9 = vsyncpa [#allocation5], 0
    // Predicated region
    $region2: #{tpu_custom_call.1} parent=1 // pred_check
      _
    $region3: #{tpu_custom_call.1} parent=1 // pred_check_branch
      %11 = sbr.rel (0) target = $region5
    $region4: #{tpu_custom_call.1} parent=1 // pred_region
      _
    $region5: #{tpu_custom_call.1} parent=1 // pred_fallthru
      _
    // Predicated region
    $region6: #{tpu_custom_call.1} parent=1 // pred_check
      _
    $region7: #{tpu_custom_call.1} parent=1 // pred_check_branch
      %13 = sbr.rel (0) target = $region9
    $region8: #{tpu_custom_call.1} parent=1 // pred_region
      _
    $region9: #{tpu_custom_call.1} parent=1 // pred_fallthru
      _
    // Predicated region
    $region10: #{tpu_custom_call.1} parent=1 // pred_check
      _
    $region11: #{tpu_custom_call.1} parent=1 // pred_check_branch
      %15 = sbr.rel (0) target = $region13
    $region12: #{tpu_custom_call.1} parent=1 // pred_region
      _
    $region13: #{tpu_custom_call.1} parent=1 // pred_fallthru
      _
    // Predicated region
    $region14: #{tpu_custom_call.1} parent=1 // pred_check
      _
    $region15: #{tpu_custom_call.1} parent=1 // pred_check_branch
      %17 = sbr.rel (0) target = $region17
    $region16: #{tpu_custom_call.1} parent=1 // pred_region
      _
    $region17: #{tpu_custom_call.1} parent=1 // pred_fallthru
      _
    %v18 = vld [vmem:[%s3] sm:$0xff]
    %v19 = vld [vmem:[%s3 + $0x8] sm:$0xff]
    %v20 = vld [vmem:[%s3 + $0x10] sm:$0xff]
    %v21 = vld [vmem:[%s3 + $0x18] sm:$0xff]
    %v22 = vld [vmem:[%s3 + $0x20] sm:$0xff]
    %v23 = vld [vmem:[%s3 + $0x28] sm:$0xff]
    %v24 = vld [vmem:[%s3 + $0x30] sm:$0xff]
    %v25 = vld [vmem:[%s3 + $0x38] sm:$0xff]
    %v26 = vld [vmem:[%s3 + $0x40] sm:$0xff]
    %v27 = vld [vmem:[%s3 + $0x48] sm:$0xff]
    %v28 = vld [vmem:[%s3 + $0x50] sm:$0xff]
    %v29 = vld [vmem:[%s3 + $0x58] sm:$0xff]
    %v30 = vld [vmem:[%s3 + $0x60] sm:$0xff]
    %v31 = vld [vmem:[%s3 + $0x68] sm:$0xff]
    %v32 = vld [vmem:[%s3 + $0x70] sm:$0xff]
    %v33 = vld [vmem:[%s3 + $0x78] sm:$0xff]
    %v34 = vld [vmem:[%s3 + $0x80] sm:$0xff]
    %v35 = vld [vmem:[%s3 + $0x88] sm:$0xff]
    %v36 = vld [vmem:[%s3 + $0x90] sm:$0xff]
    %v37 = vld [vmem:[%s3 + $0x98] sm:$0xff]
    %v38 = vld [vmem:[%s3 + $0xa0] sm:$0xff]
    %v39 = vld [vmem:[%s3 + $0xa8] sm:$0xff]
    %v40 = vld [vmem:[%s3 + $0xb0] sm:$0xff]
    %v41 = vld [vmem:[%s3 + $0xb8] sm:$0xff]
    %v42 = vld [vmem:[%s3 + $0xc0] sm:$0xff]
    %v43 = vld [vmem:[%s3 + $0xc8] sm:$0xff]
    %v44 = vld [vmem:[%s3 + $0xd0] sm:$0xff]
    %v45 = vld [vmem:[%s3 + $0xd8] sm:$0xff]
    %v46 = vld [vmem:[%s3 + $0xe0] sm:$0xff]
    %v47 = vld [vmem:[%s3 + $0xe8] sm:$0x1f]
    %v48 = vld [vmem:[%s0] sm:$0xff]
    %v49 = vperm.slane %v46, 0
    %51 = vst [vmem:[#allocation1] ss:$2 sm:$0xff] %v48
    %v52 = vld.sshfl [vmem:[#allocation1] sm:$0xff pattern:$0x75316420]
    %v53 = vld.sshfl [vmem:[#allocation1 + $0x8] sm:$0xff pattern:$0x75316420]
    %vm55 = vcmask 523264
    %v56 = vsel %vm55, %v53, 0
    %58 = vmatpush.msra.mxu0 %v33
    %59 = vmatpush.msra.mxu0 %v32
    %60 = vmatpush.msra.mxu0 %v31
    %61 = vmatpush.msra.mxu0 %v30
    %62 = vmatpush.msra.mxu0 %v29
    %63 = vmatpush.msra.mxu0 %v28
    %64 = vmatpush.msra.mxu0 %v27
    %65 = vmatpush.msra.mxu0 %v26
    %66 = vmatpush.msra.mxu0 %v25
    %67 = vmatpush.msra.mxu0 %v24
    %68 = vmatpush.msra.mxu0 %v23
    %69 = vmatpush.msra.mxu0 %v22
    %70 = vmatpush.msra.mxu0 %v21
    %71 = vmatpush.msra.mxu0 %v20
    %72 = vmatpush.msra.mxu0 %v19
    %73 = vmatpush.msra.mxu0 %v18
    %74 = vmatmul.f32.gmra.mxu0 %v52
    %v75 = vpop.f32.mrf.mxu0
    %v76 = vadd.f32 %v49, %v75
    %77 = vdwg.mxu0
    %78 = vmatpush.msra.mxu0 0.0
    %79 = vmatpush.msra.mxu0 0.0
    %80 = vmatpush.msra.mxu0 0.0
    %81 = vmatpush.msra.mxu0 0.0
    %82 = vmatpush.msra.mxu0 0.0
    %83 = vmatpush.msra.mxu0 0.0
    %84 = vmatpush.msra.mxu0 0.0
    %85 = vmatpush.msra.mxu0 0.0
    %86 = vmatpush.msra.mxu0 %v41
    %87 = vmatpush.msra.mxu0 %v40
    %88 = vmatpush.msra.mxu0 %v39
    %89 = vmatpush.msra.mxu0 %v38
    %90 = vmatpush.msra.mxu0 %v37
    %91 = vmatpush.msra.mxu0 %v36
    %92 = vmatpush.msra.mxu0 %v35
    %93 = vmatpush.msra.mxu0 %v34
    %94 = vmatmul.f32.gmra.mxu0 %v56
    %v95 = vpop.f32.mrf.mxu0
    %v96 = vadd.f32 %v76, %v95
    %97 = vdwg.mxu0
    %v99 = vrot.slane %v47, 7
    %v101 = vadd.f32 %v46, %v99
    %vm102 = vcmask 254977
    %103 = vst.msk [vmem:[#allocation2 - $0x1] sm:$0x2] %vm102, %v101
    %v104 = vrot.slane %v47, 1
    %v106 = vadd.f32 %v96, %v104
    %vm107 = vcmask 257024
    %108 = vst.msk [vmem:[#allocation2 + $0x1] sm:$0xf] %vm107, %v106
    %v109 = vld [vmem:[#allocation2] sm:$0x1f]
    %v110 = vld [vmem:[%s1] sm:$0xff]
    %v111 = vld [vmem:[%s1 + $0x8] sm:$0xff]
    %v112 = vld [vmem:[%s1 + $0x10] sm:$0xff]
    %v113 = vld [vmem:[%s1 + $0x18] sm:$0xff]
    %v114 = vld [vmem:[%s1 + $0x20] sm:$0xff]
    %v115 = vld [vmem:[%s1 + $0x28] sm:$0xff]
    %v116 = vld [vmem:[%s1 + $0x30] sm:$0xff]
    %v117 = vld [vmem:[%s1 + $0x38] sm:$0xff]
    %v118 = vld [vmem:[%s1 + $0x40] sm:$0xff]
    %v119 = vld [vmem:[%s1 + $0x48] sm:$0xff]
    %v120 = vld [vmem:[%s1 + $0x50] sm:$0xff]
    %v121 = vld [vmem:[%s1 + $0x58] sm:$0xff]
    %v122 = vld [vmem:[%s2] sm:$0xff]
    %vm123 = vcmask 258048
    %v124 = vsel %vm123, %v109, 0.0
    %125 = vadd.xlane.f32.xlu0 %v124
    %v126 = vpop.xlane.xlu0 %125
    %v127 = vrcp.pop 32.0
    %v128 = vmul.f32 32.0, %v127
    %v129 = vsub.f32 1.0, %v128
    %v130 = vmul.f32 %v127, %v129
    %v131 = vadd.f32 %v127, %v130
    %vm132 = vweird.f32 %v127
    %v133 = vsel %vm132, %v127, %v131
    %v134 = vmul.f32 %v126, %v133
    %v135 = vsub.f32 %v109, %v134
    %v136 = vmul.f32 %v135, %v135
    %v137 = vsel %vm123, %v136, 0.0
    %138 = vadd.xlane.f32.xlu0 %v137
    %v139 = vpop.xlane.xlu0 %138
    %v140 = vmul.f32 %v139, %v133
    %v141 = vadd.f32 %v140, 1e-12
    %v142 = vrsqrt.pop %v141
    %v143 = vmul.f32 %v142, %v141
    %v144 = vmul.f32 %v143, %v142
    %v145 = vmul.f32 0.5, %v144
    %v146 = vsub.f32 1.5, %v145
    %v147 = vmul.f32 %v142, %v146
    %vm148 = vweird.f32 %v141
    %vm149 = vweird.f32 %v142
    %vm150 = vmor %vm148, %vm149
    %v151 = vsel %vm150, %v142, %v147
    %v152 = vmul.f32 %v135, %v151
    %v153 = vperm.slane %v122, 0
    %v154 = vmul.f32 %v152, %v153
    %v155 = vperm.slane %v122, 1
    %v156 = vadd.f32 %v154, %v155
    %v157 = vperm.slane %v122, 2
    %vm158 = vcmask 261120
    %v160 = vsel %vm158, %v156, 0
    %162 = vmatpush.msra.mxu0 0.0
    %163 = vmatpush.msra.mxu0 0.0
    %164 = vmatpush.msra.mxu0 0.0
    %165 = vmatpush.msra.mxu0 0.0
    %166 = vmatpush.msra.mxu0 0.0
    %167 = vmatpush.msra.mxu0 0.0
    %168 = vmatpush.msra.mxu0 0.0
    %169 = vmatpush.msra.mxu0 0.0
    %170 = vmatpush.msra.mxu0 0.0
    %171 = vmatpush.msra.mxu0 0.0
    %172 = vmatpush.msra.mxu0 0.0
    %173 = vmatpush.msra.mxu0 0.0
    %174 = vmatpush.msra.mxu0 %v119
    %175 = vmatpush.msra.mxu0 %v116
    %176 = vmatpush.msra.mxu0 %v113
    %177 = vmatpush.msra.mxu0 %v110
    %178 = vmatmul.f32.gmra.mxu0 %v160
    %v179 = vpop.f32.mrf.mxu0
    %v180 = vadd.f32 %v157, %v179
    %181 = vdwg.mxu0
    %183 = vrot.lane.b32.xlu0 %v180, 96
    %v184 = vpop.permute.xlu0 %183
    %vm185 = vcmask 130048
    %v186 = vsel %vm185, %v180, 0
    %v188 = vsel %vm185, %v184, 0
    %190 = vmatpush.xpose.msra.mxu0 0.0
    %191 = vmatpush.xpose.msra.mxu0 0.0
    %192 = vmatpush.xpose.msra.mxu0 0.0
    %193 = vmatpush.xpose.msra.mxu0 0.0
    %194 = vmatpush.xpose.msra.mxu0 0.0
    %195 = vmatpush.xpose.msra.mxu0 0.0
    %196 = vmatpush.xpose.msra.mxu0 0.0
    %197 = vmatpush.xpose.msra.mxu0 0.0
    %198 = vmatpush.xpose.msra.mxu0 0.0
    %199 = vmatpush.xpose.msra.mxu0 0.0
    %200 = vmatpush.xpose.msra.mxu0 0.0
    %201 = vmatpush.xpose.msra.mxu0 0.0
    %202 = vmatpush.xpose.msra.mxu0 0.0
    %203 = vmatpush.xpose.msra.mxu0 0.0
    %204 = vmatpush.xpose.msra.mxu0 0.0
    %205 = vmatpush.xpose.msra.mxu0 %v188
    %206 = vmatmul.f32.gmra.mxu0 %v186
    %v207 = vpop.f32.mrf.mxu0
    %v208 = vadd.f32 0.0, %v207
    %209 = vdwg.mxu0
    %v210 = vmul.f32 %v208, 0.25
    %vm211 = vcmask 36864
    %v212 = vsel %vm211, %v210, -inf
    %213 = vmax.xlane.f32.xlu0 %v212
    %v214 = vpop.xlane.xlu0 %213
    %v215 = vsub.f32 %v210, %v214
    %v216 = vmul.f32 %v215, 1.442695
    %v217 = vpow.pop %v216
    %v218 = vsel %vm211, %v217, 0.0
    %219 = vadd.xlane.f32.xlu0 %v218
    %v220 = vpop.xlane.xlu0 %219
    %v221 = vrcp.pop %v220
    %v222 = vmul.f32 %v220, %v221
    %v223 = vsub.f32 1.0, %v222
    %v224 = vmul.f32 %v221, %v223
    %v225 = vadd.f32 %v221, %v224
    %vm226 = vweird.f32 %v220
    %vm227 = vweird.f32 %v221
    %vm228 = vmor %vm226, %vm227
    %v229 = vsel %vm228, %v221, %v225
    %v230 = vand.u32 2147483647, %v220
    %vm231 = vcmp.eq.f32.partialorder %v230, 8.507059e+37
    %v232 = vand.u32 %v220, 2147483648
    %v233 = vor.u32 1.1754944e-38, %v232
    %v234 = vsel %vm231, %v233, %v229
    %v235 = vmul.f32 %v217, %v234
    %236 = vrot.lane.b32.xlu0 %v180, 64
    %v237 = vpop.permute.xlu0 %236
    %vm238 = vcmask 39936
    %v240 = vsel %vm238, %v235, 0
    %vm242 = vcmask 1044480
    %v243 = vsel %vm242, %v237, 0
    %245 = vmatpush.msra.mxu0 0.0
    %246 = vmatpush.msra.mxu0 0.0
    %247 = vmatpush.msra.mxu0 0.0
    %248 = vmatpush.msra.mxu0 0.0
    %249 = vmatpush.msra.mxu0 0.0
    %250 = vmatpush.msra.mxu0 0.0
    %251 = vmatpush.msra.mxu0 0.0
    %252 = vmatpush.msra.mxu0 0.0
    %253 = vmatpush.msra.mxu0 0.0
    %254 = vmatpush.msra.mxu0 0.0
    %255 = vmatpush.msra.mxu0 0.0
    %256 = vmatpush.msra.mxu0 0.0
    %257 = vmatpush.msra.mxu0 0.0
    %258 = vmatpush.msra.mxu0 0.0
    %259 = vmatpush.msra.mxu0 0.0
    %260 = vmatpush.msra.mxu0 %v243
    %261 = vmatmul.f32.gmra.mxu0 %v240
    %v262 = vpop.f32.mrf.mxu0
    %v263 = vadd.f32 0.0, %v262
    %264 = vdwg.mxu0
    %vm265 = vcmask 126976
    %266 = vst.msk [vmem:[#allocation3] sm:$0x1f] %vm265, %v263
    %267 = vrot.lane.b32.xlu0 %v180, 112
    %v268 = vpop.permute.xlu0 %267
    %269 = vrot.lane.b32.xlu0 %v180, 80
    %v270 = vpop.permute.xlu0 %269
    %v271 = vsel %vm185, %v268, 0
    %v273 = vsel %vm185, %v270, 0
    %275 = vmatpush.xpose.msra.mxu0 0.0
    %276 = vmatpush.xpose.msra.mxu0 0.0
    %277 = vmatpush.xpose.msra.mxu0 0.0
    %278 = vmatpush.xpose.msra.mxu0 0.0
    %279 = vmatpush.xpose.msra.mxu0 0.0
    %280 = vmatpush.xpose.msra.mxu0 0.0
    %281 = vmatpush.xpose.msra.mxu0 0.0
    %282 = vmatpush.xpose.msra.mxu0 0.0
    %283 = vmatpush.xpose.msra.mxu0 0.0
    %284 = vmatpush.xpose.msra.mxu0 0.0
    %285 = vmatpush.xpose.msra.mxu0 0.0
    %286 = vmatpush.xpose.msra.mxu0 0.0
    %287 = vmatpush.xpose.msra.mxu0 0.0
    %288 = vmatpush.xpose.msra.mxu0 0.0
    %289 = vmatpush.xpose.msra.mxu0 0.0
    %290 = vmatpush.xpose.msra.mxu0 %v273
    %291 = vmatmul.f32.gmra.mxu0 %v271
    %v292 = vpop.f32.mrf.mxu0
    %v293 = vadd.f32 0.0, %v292
    %294 = vdwg.mxu0
    %v295 = vmul.f32 %v293, 0.25
    %v296 = vsel %vm211, %v295, -inf
    %297 = vmax.xlane.f32.xlu0 %v296
    %v298 = vpop.xlane.xlu0 %297
    %v299 = vsub.f32 %v295, %v298
    %v300 = vmul.f32 %v299, 1.442695
    %v301 = vpow.pop %v300
    %v302 = vsel %vm211, %v301, 0.0
    %303 = vadd.xlane.f32.xlu0 %v302
    %v304 = vpop.xlane.xlu0 %303
    %v305 = vrcp.pop %v304
    %v306 = vmul.f32 %v304, %v305
    %v307 = vsub.f32 1.0, %v306
    %v308 = vmul.f32 %v305, %v307
    %v309 = vadd.f32 %v305, %v308
    %vm310 = vweird.f32 %v304
    %vm311 = vweird.f32 %v305
    %vm312 = vmor %vm310, %vm311
    %v313 = vsel %vm312, %v305, %v309
    %v314 = vand.u32 2147483647, %v304
    %vm315 = vcmp.eq.f32.partialorder %v314, 8.507059e+37
    %v316 = vand.u32 %v304, 2147483648
    %v317 = vor.u32 1.1754944e-38, %v316
    %v318 = vsel %vm315, %v317, %v313
    %v319 = vmul.f32 %v301, %v318
    %320 = vrot.lane.b32.xlu0 %v180, 48
    %v321 = vpop.permute.xlu0 %320
    %v323 = vsel %vm238, %v319, 0
    %v325 = vsel %vm242, %v321, 0
    %327 = vmatpush.msra.mxu0 0.0
    %328 = vmatpush.msra.mxu0 0.0
    %329 = vmatpush.msra.mxu0 0.0
    %330 = vmatpush.msra.mxu0 0.0
    %331 = vmatpush.msra.mxu0 0.0
    %332 = vmatpush.msra.mxu0 0.0
    %333 = vmatpush.msra.mxu0 0.0
    %334 = vmatpush.msra.mxu0 0.0
    %335 = vmatpush.msra.mxu0 0.0
    %336 = vmatpush.msra.mxu0 0.0
    %337 = vmatpush.msra.mxu0 0.0
    %338 = vmatpush.msra.mxu0 0.0
    %339 = vmatpush.msra.mxu0 0.0
    %340 = vmatpush.msra.mxu0 0.0
    %341 = vmatpush.msra.mxu0 0.0
    %342 = vmatpush.msra.mxu0 %v325
    %343 = vmatmul.f32.gmra.mxu0 %v323
    %v344 = vpop.f32.mrf.mxu0
    %v345 = vadd.f32 0.0, %v344
    %346 = vdwg.mxu0
    %348 = vrot.lane.b32.xlu0 %v345, 16
    %v349 = vpop.permute.xlu0 %348
    %vm351 = vcmask 258176
    %352 = vst.msk [vmem:[#allocation3] sm:$0x1f] %vm351, %v349
    %v353 = vld [vmem:[#allocation3] sm:$0x1f]
    %358 = vrot.lane.b32.xlu0 %v110, 32
    %v359 = vpop.permute.xlu0 %358
    %360 = vrot.lane.b32.xlu0 %v113, 32
    %v361 = vpop.permute.xlu0 %360
    %362 = vrot.lane.b32.xlu0 %v116, 32
    %v363 = vpop.permute.xlu0 %362
    %364 = vrot.lane.b32.xlu0 %v119, 32
    %v365 = vpop.permute.xlu0 %364
    %v371 = vsel %vm158, %v353, 0
    %373 = vmatpush.msra.mxu0 0.0
    %374 = vmatpush.msra.mxu0 0.0
    %375 = vmatpush.msra.mxu0 0.0
    %376 = vmatpush.msra.mxu0 0.0
    %377 = vmatpush.msra.mxu0 0.0
    %378 = vmatpush.msra.mxu0 0.0
    %379 = vmatpush.msra.mxu0 0.0
    %380 = vmatpush.msra.mxu0 0.0
    %381 = vmatpush.msra.mxu0 0.0
    %382 = vmatpush.msra.mxu0 0.0
    %383 = vmatpush.msra.mxu0 0.0
    %384 = vmatpush.msra.mxu0 0.0
    %385 = vmatpush.msra.mxu0 %v365
    %386 = vmatpush.msra.mxu0 %v363
    %387 = vmatpush.msra.mxu0 %v361
    %388 = vmatpush.msra.mxu0 %v359
    %389 = vmatmul.f32.gmra.mxu0 %v371
    %v390 = vpop.f32.mrf.mxu0
    %v391 = vadd.f32 0.0, %v390
    %392 = vdwg.mxu0
    %v393 = vadd.f32 %v109, %v391
    %v394 = vperm.slane %v122, 3
    %v395 = vadd.f32 %v393, %v394
    %v396 = vsel %vm123, %v395, 0.0
    %397 = vadd.xlane.f32.xlu0 %v396
    %v398 = vpop.xlane.xlu0 %397
    %v399 = vmul.f32 %v398, %v133
    %v400 = vsub.f32 %v395, %v399
    %v401 = vmul.f32 %v400, %v400
    %v402 = vsel %vm123, %v401, 0.0
    %403 = vadd.xlane.f32.xlu0 %v402
    %v404 = vpop.xlane.xlu0 %403
    %v405 = vmul.f32 %v404, %v133
    %v406 = vadd.f32 %v405, 1e-12
    %v407 = vrsqrt.pop %v406
    %v408 = vmul.f32 %v407, %v406
    %v409 = vmul.f32 %v408, %v407
    %v410 = vmul.f32 0.5, %v409
    %v411 = vsub.f32 1.5, %v410
    %v412 = vmul.f32 %v407, %v411
    %vm413 = vweird.f32 %v406
    %vm414 = vweird.f32 %v407
    %vm415 = vmor %vm413, %vm414
    %v416 = vsel %vm415, %v407, %v412
    %v417 = vmul.f32 %v400, %v416
    %v418 = vperm.slane %v122, 4
    %v419 = vmul.f32 %v417, %v418
    %v420 = vperm.slane %v122, 5
    %v421 = vadd.f32 %v419, %v420
    %v422 = vperm.slane %v122, 6
    %v424 = vsel %vm158, %v421, 0
    %426 = vmatpush.msra.mxu0 0.0
    %427 = vmatpush.msra.mxu0 0.0
    %428 = vmatpush.msra.mxu0 0.0
    %429 = vmatpush.msra.mxu0 0.0
    %430 = vmatpush.msra.mxu0 0.0
    %431 = vmatpush.msra.mxu0 0.0
    %432 = vmatpush.msra.mxu0 0.0
    %433 = vmatpush.msra.mxu0 0.0
    %434 = vmatpush.msra.mxu0 0.0
    %435 = vmatpush.msra.mxu0 0.0
    %436 = vmatpush.msra.mxu0 0.0
    %437 = vmatpush.msra.mxu0 0.0
    %438 = vmatpush.msra.mxu0 %v120
    %439 = vmatpush.msra.mxu0 %v117
    %440 = vmatpush.msra.mxu0 %v114
    %441 = vmatpush.msra.mxu0 %v111
    %442 = vmatmul.f32.gmra.mxu0 %v424
    %v443 = vpop.f32.mrf.mxu0
    %v444 = vadd.f32 %v422, %v443
    %445 = vdwg.mxu0
    %v446 = vmul.f32 %v444, %v444
    %v447 = vmul.f32 %v444, %v446
    %v448 = vmul.f32 %v447, 0.044715
    %v449 = vadd.f32 %v444, %v448
    %v450 = vmul.f32 %v449, 0.7978846
    %v451 = vtanh.pop %v450
    %v452 = vadd.f32 %v451, 1.0
    %v453 = vmul.f32 %v452, 0.5
    %v454 = vmul.f32 %v444, %v453
    %v455 = vperm.slane %v122, 7
    %456 = vmatpush.xpose.msra.mxu0 0.0
    %457 = vmatpush.xpose.msra.mxu0 0.0
    %458 = vmatpush.xpose.msra.mxu0 0.0
    %459 = vmatpush.xpose.msra.mxu0 0.0
    %460 = vmatpush.xpose.msra.mxu0 0.0
    %461 = vmatpush.xpose.msra.mxu0 0.0
    %462 = vmatpush.xpose.msra.mxu0 0.0
    %463 = vmatpush.xpose.msra.mxu0 0.0
    %464 = vmatpush.xpose.msra.mxu0 0.0
    %465 = vmatpush.xpose.msra.mxu0 0.0
    %466 = vmatpush.xpose.msra.mxu0 0.0
    %467 = vmatpush.xpose.msra.mxu0 0.0
    %468 = vmatpush.xpose.msra.mxu0 %v121
    %469 = vmatpush.xpose.msra.mxu0 %v118
    %470 = vmatpush.xpose.msra.mxu0 %v115
    %471 = vmatpush.xpose.msra.mxu0 %v112
    %472 = vmatmul.f32.gmra.mxu0 %v454
    %v473 = vpop.f32.mrf.mxu0
    %v474 = vadd.f32 %v455, %v473
    %475 = vdwg.mxu0
    %v476 = vadd.f32 %v395, %v474
    %s477 = scalar_lea.vmem %s1, 96
    %v478 = vld [vmem:[%s477] sm:$0xff]
    %v479 = vld [vmem:[%s477 + $0x8] sm:$0xff]
    %v480 = vld [vmem:[%s477 + $0x10] sm:$0xff]
    %v481 = vld [vmem:[%s477 + $0x18] sm:$0xff]
    %v482 = vld [vmem:[%s477 + $0x20] sm:$0xff]
    %v483 = vld [vmem:[%s477 + $0x28] sm:$0xff]
    %v484 = vld [vmem:[%s477 + $0x30] sm:$0xff]
    %v485 = vld [vmem:[%s477 + $0x38] sm:$0xff]
    %v486 = vld [vmem:[%s477 + $0x40] sm:$0xff]
    %v487 = vld [vmem:[%s477 + $0x48] sm:$0xff]
    %v488 = vld [vmem:[%s477 + $0x50] sm:$0xff]
    %v489 = vld [vmem:[%s477 + $0x58] sm:$0xff]
    %s490 = scalar_lea.vmem %s2, 8
    %v491 = vld [vmem:[%s490] sm:$0xff]
    %v492 = vsel %vm123, %v476, 0.0
    %493 = vadd.xlane.f32.xlu0 %v492
    %v494 = vpop.xlane.xlu0 %493
    %v495 = vmul.f32 %v494, %v133
    %v496 = vsub.f32 %v476, %v495
    %v497 = vmul.f32 %v496, %v496
    %v498 = vsel %vm123, %v497, 0.0
    %499 = vadd.xlane.f32.xlu0 %v498
    %v500 = vpop.xlane.xlu0 %499
    %v501 = vmul.f32 %v500, %v133
    %v502 = vadd.f32 %v501, 1e-12
    %v503 = vrsqrt.pop %v502
    %v504 = vmul.f32 %v503, %v502
    %v505 = vmul.f32 %v504, %v503
    %v506 = vmul.f32 0.5, %v505
    %v507 = vsub.f32 1.5, %v506
    %v508 = vmul.f32 %v503, %v507
    %vm509 = vweird.f32 %v502
    %vm510 = vweird.f32 %v503
    %vm511 = vmor %vm509, %vm510
    %v512 = vsel %vm511, %v503, %v508
    %v513 = vmul.f32 %v496, %v512
    %v514 = vperm.slane %v491, 0
    %v515 = vmul.f32 %v513, %v514
    %v516 = vperm.slane %v491, 1
    %v517 = vadd.f32 %v515, %v516
    %v518 = vperm.slane %v491, 2
    %v520 = vsel %vm158, %v517, 0
    %522 = vmatpush.msra.mxu0 0.0
    %523 = vmatpush.msra.mxu0 0.0
    %524 = vmatpush.msra.mxu0 0.0
    %525 = vmatpush.msra.mxu0 0.0
    %526 = vmatpush.msra.mxu0 0.0
    %527 = vmatpush.msra.mxu0 0.0
    %528 = vmatpush.msra.mxu0 0.0
    %529 = vmatpush.msra.mxu0 0.0
    %530 = vmatpush.msra.mxu0 0.0
    %531 = vmatpush.msra.mxu0 0.0
    %532 = vmatpush.msra.mxu0 0.0
    %533 = vmatpush.msra.mxu0 0.0
    %534 = vmatpush.msra.mxu0 %v487
    %535 = vmatpush.msra.mxu0 %v484
    %536 = vmatpush.msra.mxu0 %v481
    %537 = vmatpush.msra.mxu0 %v478
    %538 = vmatmul.f32.gmra.mxu0 %v520
    %v539 = vpop.f32.mrf.mxu0
    %v540 = vadd.f32 %v518, %v539
    %541 = vdwg.mxu0
    %543 = vrot.lane.b32.xlu0 %v540, 96
    %v544 = vpop.permute.xlu0 %543
    %v545 = vsel %vm185, %v540, 0
    %v547 = vsel %vm185, %v544, 0
    %549 = vmatpush.xpose.msra.mxu0 0.0
    %550 = vmatpush.xpose.msra.mxu0 0.0
    %551 = vmatpush.xpose.msra.mxu0 0.0
    %552 = vmatpush.xpose.msra.mxu0 0.0
    %553 = vmatpush.xpose.msra.mxu0 0.0
    %554 = vmatpush.xpose.msra.mxu0 0.0
    %555 = vmatpush.xpose.msra.mxu0 0.0
    %556 = vmatpush.xpose.msra.mxu0 0.0
    %557 = vmatpush.xpose.msra.mxu0 0.0
    %558 = vmatpush.xpose.msra.mxu0 0.0
    %559 = vmatpush.xpose.msra.mxu0 0.0
    %560 = vmatpush.xpose.msra.mxu0 0.0
    %561 = vmatpush.xpose.msra.mxu0 0.0
    %562 = vmatpush.xpose.msra.mxu0 0.0
    %563 = vmatpush.xpose.msra.mxu0 0.0
    %564 = vmatpush.xpose.msra.mxu0 %v547
    %565 = vmatmul.f32.gmra.mxu0 %v545
    %v566 = vpop.f32.mrf.mxu0
    %v567 = vadd.f32 0.0, %v566
    %568 = vdwg.mxu0
    %v569 = vmul.f32 %v567, 0.25
    %v570 = vsel %vm211, %v569, -inf
    %571 = vmax.xlane.f32.xlu0 %v570
    %v572 = vpop.xlane.xlu0 %571
    %v573 = vsub.f32 %v569, %v572
    %v574 = vmul.f32 %v573, 1.442695
    %v575 = vpow.pop %v574
    %v576 = vsel %vm211, %v575, 0.0
    %577 = vadd.xlane.f32.xlu0 %v576
    %v578 = vpop.xlane.xlu0 %577
    %v579 = vrcp.pop %v578
    %v580 = vmul.f32 %v578, %v579
    %v581 = vsub.f32 1.0, %v580
    %v582 = vmul.f32 %v579, %v581
    %v583 = vadd.f32 %v579, %v582
    %vm584 = vweird.f32 %v578
    %vm585 = vweird.f32 %v579
    %vm586 = vmor %vm584, %vm585
    %v587 = vsel %vm586, %v579, %v583
    %v588 = vand.u32 2147483647, %v578
    %vm589 = vcmp.eq.f32.partialorder %v588, 8.507059e+37
    %v590 = vand.u32 %v578, 2147483648
    %v591 = vor.u32 1.1754944e-38, %v590
    %v592 = vsel %vm589, %v591, %v587
    %v593 = vmul.f32 %v575, %v592
    %594 = vrot.lane.b32.xlu0 %v540, 64
    %v595 = vpop.permute.xlu0 %594
    %v597 = vsel %vm238, %v593, 0
    %v599 = vsel %vm242, %v595, 0
    %601 = vmatpush.msra.mxu0 0.0
    %602 = vmatpush.msra.mxu0 0.0
    %603 = vmatpush.msra.mxu0 0.0
    %604 = vmatpush.msra.mxu0 0.0
    %605 = vmatpush.msra.mxu0 0.0
    %606 = vmatpush.msra.mxu0 0.0
    %607 = vmatpush.msra.mxu0 0.0
    %608 = vmatpush.msra.mxu0 0.0
    %609 = vmatpush.msra.mxu0 0.0
    %610 = vmatpush.msra.mxu0 0.0
    %611 = vmatpush.msra.mxu0 0.0
    %612 = vmatpush.msra.mxu0 0.0
    %613 = vmatpush.msra.mxu0 0.0
    %614 = vmatpush.msra.mxu0 0.0
    %615 = vmatpush.msra.mxu0 0.0
    %616 = vmatpush.msra.mxu0 %v599
    %617 = vmatmul.f32.gmra.mxu0 %v597
    %v618 = vpop.f32.mrf.mxu0
    %v619 = vadd.f32 0.0, %v618
    %620 = vdwg.mxu0
    %621 = vst.msk [vmem:[#allocation3] sm:$0x1f] %vm265, %v619
    %622 = vrot.lane.b32.xlu0 %v540, 112
    %v623 = vpop.permute.xlu0 %622
    %624 = vrot.lane.b32.xlu0 %v540, 80
    %v625 = vpop.permute.xlu0 %624
    %v626 = vsel %vm185, %v623, 0
    %v628 = vsel %vm185, %v625, 0
    %630 = vmatpush.xpose.msra.mxu0 0.0
    %631 = vmatpush.xpose.msra.mxu0 0.0
    %632 = vmatpush.xpose.msra.mxu0 0.0
    %633 = vmatpush.xpose.msra.mxu0 0.0
    %634 = vmatpush.xpose.msra.mxu0 0.0
    %635 = vmatpush.xpose.msra.mxu0 0.0
    %636 = vmatpush.xpose.msra.mxu0 0.0
    %637 = vmatpush.xpose.msra.mxu0 0.0
    %638 = vmatpush.xpose.msra.mxu0 0.0
    %639 = vmatpush.xpose.msra.mxu0 0.0
    %640 = vmatpush.xpose.msra.mxu0 0.0
    %641 = vmatpush.xpose.msra.mxu0 0.0
    %642 = vmatpush.xpose.msra.mxu0 0.0
    %643 = vmatpush.xpose.msra.mxu0 0.0
    %644 = vmatpush.xpose.msra.mxu0 0.0
    %645 = vmatpush.xpose.msra.mxu0 %v628
    %646 = vmatmul.f32.gmra.mxu0 %v626
    %v647 = vpop.f32.mrf.mxu0
    %v648 = vadd.f32 0.0, %v647
    %649 = vdwg.mxu0
    %v650 = vmul.f32 %v648, 0.25
    %v651 = vsel %vm211, %v650, -inf
    %652 = vmax.xlane.f32.xlu0 %v651
    %v653 = vpop.xlane.xlu0 %652
    %v654 = vsub.f32 %v650, %v653
    %v655 = vmul.f32 %v654, 1.442695
    %v656 = vpow.pop %v655
    %v657 = vsel %vm211, %v656, 0.0
    %658 = vadd.xlane.f32.xlu0 %v657
    %v659 = vpop.xlane.xlu0 %658
    %v660 = vrcp.pop %v659
    %v661 = vmul.f32 %v659, %v660
    %v662 = vsub.f32 1.0, %v661
    %v663 = vmul.f32 %v660, %v662
    %v664 = vadd.f32 %v660, %v663
    %vm665 = vweird.f32 %v659
    %vm666 = vweird.f32 %v660
    %vm667 = vmor %vm665, %vm666
    %v668 = vsel %vm667, %v660, %v664
    %v669 = vand.u32 2147483647, %v659
    %vm670 = vcmp.eq.f32.partialorder %v669, 8.507059e+37
    %v671 = vand.u32 %v659, 2147483648
    %v672 = vor.u32 1.1754944e-38, %v671
    %v673 = vsel %vm670, %v672, %v668
    %v674 = vmul.f32 %v656, %v673
    %675 = vrot.lane.b32.xlu0 %v540, 48
    %v676 = vpop.permute.xlu0 %675
    %v678 = vsel %vm238, %v674, 0
    %v680 = vsel %vm242, %v676, 0
    %682 = vmatpush.msra.mxu0 0.0
    %683 = vmatpush.msra.mxu0 0.0
    %684 = vmatpush.msra.mxu0 0.0
    %685 = vmatpush.msra.mxu0 0.0
    %686 = vmatpush.msra.mxu0 0.0
    %687 = vmatpush.msra.mxu0 0.0
    %688 = vmatpush.msra.mxu0 0.0
    %689 = vmatpush.msra.mxu0 0.0
    %690 = vmatpush.msra.mxu0 0.0
    %691 = vmatpush.msra.mxu0 0.0
    %692 = vmatpush.msra.mxu0 0.0
    %693 = vmatpush.msra.mxu0 0.0
    %694 = vmatpush.msra.mxu0 0.0
    %695 = vmatpush.msra.mxu0 0.0
    %696 = vmatpush.msra.mxu0 0.0
    %697 = vmatpush.msra.mxu0 %v680
    %698 = vmatmul.f32.gmra.mxu0 %v678
    %v699 = vpop.f32.mrf.mxu0
    %v700 = vadd.f32 0.0, %v699
    %701 = vdwg.mxu0
    %703 = vrot.lane.b32.xlu0 %v700, 16
    %v704 = vpop.permute.xlu0 %703
    %706 = vst.msk [vmem:[#allocation3] sm:$0x1f] %vm351, %v704
    %v707 = vld [vmem:[#allocation3] sm:$0x1f]
    %712 = vrot.lane.b32.xlu0 %v478, 32
    %v713 = vpop.permute.xlu0 %712
    %714 = vrot.lane.b32.xlu0 %v481, 32
    %v715 = vpop.permute.xlu0 %714
    %716 = vrot.lane.b32.xlu0 %v484, 32
    %v717 = vpop.permute.xlu0 %716
    %718 = vrot.lane.b32.xlu0 %v487, 32
    %v719 = vpop.permute.xlu0 %718
    %v725 = vsel %vm158, %v707, 0
    %727 = vmatpush.msra.mxu0 0.0
    %728 = vmatpush.msra.mxu0 0.0
    %729 = vmatpush.msra.mxu0 0.0
    %730 = vmatpush.msra.mxu0 0.0
    %731 = vmatpush.msra.mxu0 0.0
    %732 = vmatpush.msra.mxu0 0.0
    %733 = vmatpush.msra.mxu0 0.0
    %734 = vmatpush.msra.mxu0 0.0
    %735 = vmatpush.msra.mxu0 0.0
    %736 = vmatpush.msra.mxu0 0.0
    %737 = vmatpush.msra.mxu0 0.0
    %738 = vmatpush.msra.mxu0 0.0
    %739 = vmatpush.msra.mxu0 %v719
    %740 = vmatpush.msra.mxu0 %v717
    %741 = vmatpush.msra.mxu0 %v715
    %742 = vmatpush.msra.mxu0 %v713
    %743 = vmatmul.f32.gmra.mxu0 %v725
    %v744 = vpop.f32.mrf.mxu0
    %v745 = vadd.f32 0.0, %v744
    %746 = vdwg.mxu0
    %v747 = vadd.f32 %v476, %v745
    %v748 = vperm.slane %v491, 3
    %v749 = vadd.f32 %v747, %v748
    %v750 = vsel %vm123, %v749, 0.0
    %751 = vadd.xlane.f32.xlu0 %v750
    %v752 = vpop.xlane.xlu0 %751
    %v753 = vmul.f32 %v752, %v133
    %v754 = vsub.f32 %v749, %v753
    %v755 = vmul.f32 %v754, %v754
    %v756 = vsel %vm123, %v755, 0.0
    %757 = vadd.xlane.f32.xlu0 %v756
    %v758 = vpop.xlane.xlu0 %757
    %v759 = vmul.f32 %v758, %v133
    %v760 = vadd.f32 %v759, 1e-12
    %v761 = vrsqrt.pop %v760
    %v762 = vmul.f32 %v761, %v760
    %v763 = vmul.f32 %v762, %v761
    %v764 = vmul.f32 0.5, %v763
    %v765 = vsub.f32 1.5, %v764
    %v766 = vmul.f32 %v761, %v765
    %vm767 = vweird.f32 %v760
    %vm768 = vweird.f32 %v761
    %vm769 = vmor %vm767, %vm768
    %v770 = vsel %vm769, %v761, %v766
    %v771 = vmul.f32 %v754, %v770
    %v772 = vperm.slane %v491, 4
    %v773 = vmul.f32 %v771, %v772
    %v774 = vperm.slane %v491, 5
    %v775 = vadd.f32 %v773, %v774
    %v776 = vperm.slane %v491, 6
    %v778 = vsel %vm158, %v775, 0
    %780 = vmatpush.msra.mxu0 0.0
    %781 = vmatpush.msra.mxu0 0.0
    %782 = vmatpush.msra.mxu0 0.0
    %783 = vmatpush.msra.mxu0 0.0
    %784 = vmatpush.msra.mxu0 0.0
    %785 = vmatpush.msra.mxu0 0.0
    %786 = vmatpush.msra.mxu0 0.0
    %787 = vmatpush.msra.mxu0 0.0
    %788 = vmatpush.msra.mxu0 0.0
    %789 = vmatpush.msra.mxu0 0.0
    %790 = vmatpush.msra.mxu0 0.0
    %791 = vmatpush.msra.mxu0 0.0
    %792 = vmatpush.msra.mxu0 %v488
    %793 = vmatpush.msra.mxu0 %v485
    %794 = vmatpush.msra.mxu0 %v482
    %795 = vmatpush.msra.mxu0 %v479
    %796 = vmatmul.f32.gmra.mxu0 %v778
    %v797 = vpop.f32.mrf.mxu0
    %v798 = vadd.f32 %v776, %v797
    %799 = vdwg.mxu0
    %v800 = vmul.f32 %v798, %v798
    %v801 = vmul.f32 %v798, %v800
    %v802 = vmul.f32 %v801, 0.044715
    %v803 = vadd.f32 %v798, %v802
    %v804 = vmul.f32 %v803, 0.7978846
    %v805 = vtanh.pop %v804
    %v806 = vadd.f32 %v805, 1.0
    %v807 = vmul.f32 %v806, 0.5
    %v808 = vmul.f32 %v798, %v807
    %v809 = vperm.slane %v491, 7
    %810 = vmatpush.xpose.msra.mxu0 0.0
    %811 = vmatpush.xpose.msra.mxu0 0.0
    %812 = vmatpush.xpose.msra.mxu0 0.0
    %813 = vmatpush.xpose.msra.mxu0 0.0
    %814 = vmatpush.xpose.msra.mxu0 0.0
    %815 = vmatpush.xpose.msra.mxu0 0.0
    %816 = vmatpush.xpose.msra.mxu0 0.0
    %817 = vmatpush.xpose.msra.mxu0 0.0
    %818 = vmatpush.xpose.msra.mxu0 0.0
    %819 = vmatpush.xpose.msra.mxu0 0.0
    %820 = vmatpush.xpose.msra.mxu0 0.0
    %821 = vmatpush.xpose.msra.mxu0 0.0
    %822 = vmatpush.xpose.msra.mxu0 %v489
    %823 = vmatpush.xpose.msra.mxu0 %v486
    %824 = vmatpush.xpose.msra.mxu0 %v483
    %825 = vmatpush.xpose.msra.mxu0 %v480
    %826 = vmatmul.f32.gmra.mxu0 %v808
    %v827 = vpop.f32.mrf.mxu0
    %v828 = vadd.f32 %v809, %v827
    %829 = vdwg.mxu0
    %v830 = vadd.f32 %v749, %v828
    %v831 = vsel %vm123, %v830, 0.0
    %832 = vadd.xlane.f32.xlu0 %v831
    %v833 = vpop.xlane.xlu0 %832
    %v834 = vmul.f32 %v833, %v133
    %v835 = vsub.f32 %v830, %v834
    %v836 = vmul.f32 %v835, %v835
    %v837 = vsel %vm123, %v836, 0.0
    %838 = vadd.xlane.f32.xlu0 %v837
    %v839 = vpop.xlane.xlu0 %838
    %v840 = vmul.f32 %v839, %v133
    %v841 = vadd.f32 %v840, 1e-12
    %v842 = vrsqrt.pop %v841
    %v843 = vmul.f32 %v842, %v841
    %v844 = vmul.f32 %v843, %v842
    %v845 = vmul.f32 0.5, %v844
    %v846 = vsub.f32 1.5, %v845
    %v847 = vmul.f32 %v842, %v846
    %vm848 = vweird.f32 %v841
    %vm849 = vweird.f32 %v842
    %vm850 = vmor %vm848, %vm849
    %v851 = vsel %vm850, %v842, %v847
    %v852 = vmul.f32 %v835, %v851
    %v853 = vperm.slane %v46, 2
    %v854 = vmul.f32 %v852, %v853
    %v855 = vperm.slane %v46, 3
    %v856 = vadd.f32 %v854, %v855
    %v857 = vperm.slane %v46, 4
    %v859 = vrot.slane %v856, 1
    %v860 = vsel %vm158, %v859, 0
    %862 = vmatpush.msra.mxu0 0.0
    %863 = vmatpush.msra.mxu0 0.0
    %864 = vmatpush.msra.mxu0 0.0
    %865 = vmatpush.msra.mxu0 0.0
    %866 = vmatpush.msra.mxu0 0.0
    %867 = vmatpush.msra.mxu0 0.0
    %868 = vmatpush.msra.mxu0 0.0
    %869 = vmatpush.msra.mxu0 0.0
    %870 = vmatpush.msra.mxu0 0.0
    %871 = vmatpush.msra.mxu0 0.0
    %872 = vmatpush.msra.mxu0 0.0
    %873 = vmatpush.msra.mxu0 0.0
    %874 = vmatpush.msra.mxu0 %v45
    %875 = vmatpush.msra.mxu0 %v44
    %876 = vmatpush.msra.mxu0 %v43
    %877 = vmatpush.msra.mxu0 %v42
    %878 = vmatmul.f32.gmra.mxu0 %v860
    %v879 = vpop.f32.mrf.mxu0
    %v880 = vadd.f32 %v857, %v879
    %881 = vdwg.mxu0
    %v883 = vrot.slane %v880, 1
    %884 = vrot.lane.b32.xlu0 %v883, 32
    %v885 = vpop.permute.xlu0 %884
    %v887 = vrot.slane %v880, 2
    %888 = vrot.lane.b32.xlu0 %v887, 64
    %v889 = vpop.permute.xlu0 %888
    %v891 = vrot.slane %v880, 3
    %892 = vrot.lane.b32.xlu0 %v891, 96
    %v893 = vpop.permute.xlu0 %892
    %v895 = vsel %vm158, %v880, %v885
    %v896 = vsel %vm55, %v895, %v889
    %vm897 = vcmask 785408
    %v898 = vsel %vm897, %v896, %v893
    %s899 = scalar_lea.vmem %s0, 8
    %v900 = vld [vmem:[%s899] sm:$0xff]
    %902 = vst [vmem:[#allocation1] ss:$2 sm:$0xff] %v900
    %v903 = vld.sshfl [vmem:[#allocation1] sm:$0xff pattern:$0x75316420]
    %v904 = vld.sshfl [vmem:[#allocation1 + $0x8] sm:$0xff pattern:$0x75316420]
    %v906 = vsel %vm55, %v904, 0
    %908 = vmatpush.msra.mxu0 %v33
    %909 = vmatpush.msra.mxu0 %v32
    %910 = vmatpush.msra.mxu0 %v31
    %911 = vmatpush.msra.mxu0 %v30
    %912 = vmatpush.msra.mxu0 %v29
    %913 = vmatpush.msra.mxu0 %v28
    %914 = vmatpush.msra.mxu0 %v27
    %915 = vmatpush.msra.mxu0 %v26
    %916 = vmatpush.msra.mxu0 %v25
    %917 = vmatpush.msra.mxu0 %v24
    %918 = vmatpush.msra.mxu0 %v23
    %919 = vmatpush.msra.mxu0 %v22
    %920 = vmatpush.msra.mxu0 %v21
    %921 = vmatpush.msra.mxu0 %v20
    %922 = vmatpush.msra.mxu0 %v19
    %923 = vmatpush.msra.mxu0 %v18
    %924 = vmatmul.f32.gmra.mxu0 %v903
    %v925 = vpop.f32.mrf.mxu0
    %v926 = vadd.f32 %v49, %v925
    %927 = vdwg.mxu0
    %928 = vmatpush.msra.mxu0 0.0
    %929 = vmatpush.msra.mxu0 0.0
    %930 = vmatpush.msra.mxu0 0.0
    %931 = vmatpush.msra.mxu0 0.0
    %932 = vmatpush.msra.mxu0 0.0
    %933 = vmatpush.msra.mxu0 0.0
    %934 = vmatpush.msra.mxu0 0.0
    %935 = vmatpush.msra.mxu0 0.0
    %936 = vmatpush.msra.mxu0 %v41
    %937 = vmatpush.msra.mxu0 %v40
    %938 = vmatpush.msra.mxu0 %v39
    %939 = vmatpush.msra.mxu0 %v38
    %940 = vmatpush.msra.mxu0 %v37
    %941 = vmatpush.msra.mxu0 %v36
    %942 = vmatpush.msra.mxu0 %v35
    %943 = vmatpush.msra.mxu0 %v34
    %944 = vmatmul.f32.gmra.mxu0 %v906
    %v945 = vpop.f32.mrf.mxu0
    %v946 = vadd.f32 %v926, %v945
    %947 = vdwg.mxu0
    %948 = vst.msk [vmem:[#allocation2 - $0x1] sm:$0x2] %vm102, %v101
    %v949 = vadd.f32 %v946, %v104
    %950 = vst.msk [vmem:[#allocation2 + $0x1] sm:$0xf] %vm107, %v949
    %v951 = vld [vmem:[#allocation2] sm:$0x1f]
    %v952 = vld [vmem:[%s1] sm:$0xff]
    %v953 = vld [vmem:[%s1 + $0x8] sm:$0xff]
    %v954 = vld [vmem:[%s1 + $0x10] sm:$0xff]
    %v955 = vld [vmem:[%s1 + $0x18] sm:$0xff]
    %v956 = vld [vmem:[%s1 + $0x20] sm:$0xff]
    %v957 = vld [vmem:[%s1 + $0x28] sm:$0xff]
    %v958 = vld [vmem:[%s1 + $0x30] sm:$0xff]
    %v959 = vld [vmem:[%s1 + $0x38] sm:$0xff]
    %v960 = vld [vmem:[%s1 + $0x40] sm:$0xff]
    %v961 = vld [vmem:[%s1 + $0x48] sm:$0xff]
    %v962 = vld [vmem:[%s1 + $0x50] sm:$0xff]
    %v963 = vld [vmem:[%s1 + $0x58] sm:$0xff]
    %v964 = vld [vmem:[%s2] sm:$0xff]
    %v965 = vsel %vm123, %v951, 0.0
    %966 = vadd.xlane.f32.xlu0 %v965
    %v967 = vpop.xlane.xlu0 %966
    %v968 = vmul.f32 %v967, %v133
    %v969 = vsub.f32 %v951, %v968
    %v970 = vmul.f32 %v969, %v969
    %v971 = vsel %vm123, %v970, 0.0
    %972 = vadd.xlane.f32.xlu0 %v971
    %v973 = vpop.xlane.xlu0 %972
    %v974 = vmul.f32 %v973, %v133
    %v975 = vadd.f32 %v974, 1e-12
    %v976 = vrsqrt.pop %v975
    %v977 = vmul.f32 %v976, %v975
    %v978 = vmul.f32 %v977, %v976
    %v979 = vmul.f32 0.5, %v978
    %v980 = vsub.f32 1.5, %v979
    %v981 = vmul.f32 %v976, %v980
    %vm982 = vweird.f32 %v975
    %vm983 = vweird.f32 %v976
    %vm984 = vmor %vm982, %vm983
    %v985 = vsel %vm984, %v976, %v981
    %v986 = vmul.f32 %v969, %v985
    %v987 = vperm.slane %v964, 0
    %v988 = vmul.f32 %v986, %v987
    %v989 = vperm.slane %v964, 1
    %v990 = vadd.f32 %v988, %v989
    %v991 = vperm.slane %v964, 2
    %v993 = vsel %vm158, %v990, 0
    %995 = vmatpush.msra.mxu0 0.0
    %996 = vmatpush.msra.mxu0 0.0
    %997 = vmatpush.msra.mxu0 0.0
    %998 = vmatpush.msra.mxu0 0.0
    %999 = vmatpush.msra.mxu0 0.0
    %1000 = vmatpush.msra.mxu0 0.0
    %1001 = vmatpush.msra.mxu0 0.0
    %1002 = vmatpush.msra.mxu0 0.0
    %1003 = vmatpush.msra.mxu0 0.0
    %1004 = vmatpush.msra.mxu0 0.0
    %1005 = vmatpush.msra.mxu0 0.0
    %1006 = vmatpush.msra.mxu0 0.0
    %1007 = vmatpush.msra.mxu0 %v961
    %1008 = vmatpush.msra.mxu0 %v958
    %1009 = vmatpush.msra.mxu0 %v955
    %1010 = vmatpush.msra.mxu0 %v952
    %1011 = vmatmul.f32.gmra.mxu0 %v993
    %v1012 = vpop.f32.mrf.mxu0
    %v1013 = vadd.f32 %v991, %v1012
    %1014 = vdwg.mxu0
    %1016 = vrot.lane.b32.xlu0 %v1013, 96
    %v1017 = vpop.permute.xlu0 %1016
    %v1018 = vsel %vm185, %v1013, 0
    %v1020 = vsel %vm185, %v1017, 0
    %1022 = vmatpush.xpose.msra.mxu0 0.0
    %1023 = vmatpush.xpose.msra.mxu0 0.0
    %1024 = vmatpush.xpose.msra.mxu0 0.0
    %1025 = vmatpush.xpose.msra.mxu0 0.0
    %1026 = vmatpush.xpose.msra.mxu0 0.0
    %1027 = vmatpush.xpose.msra.mxu0 0.0
    %1028 = vmatpush.xpose.msra.mxu0 0.0
    %1029 = vmatpush.xpose.msra.mxu0 0.0
    %1030 = vmatpush.xpose.msra.mxu0 0.0
    %1031 = vmatpush.xpose.msra.mxu0 0.0
    %1032 = vmatpush.xpose.msra.mxu0 0.0
    %1033 = vmatpush.xpose.msra.mxu0 0.0
    %1034 = vmatpush.xpose.msra.mxu0 0.0
    %1035 = vmatpush.xpose.msra.mxu0 0.0
    %1036 = vmatpush.xpose.msra.mxu0 0.0
    %1037 = vmatpush.xpose.msra.mxu0 %v1020
    %1038 = vmatmul.f32.gmra.mxu0 %v1018
    %v1039 = vpop.f32.mrf.mxu0
    %v1040 = vadd.f32 0.0, %v1039
    %1041 = vdwg.mxu0
    %v1042 = vmul.f32 %v1040, 0.25
    %v1043 = vsel %vm211, %v1042, -inf
    %1044 = vmax.xlane.f32.xlu0 %v1043
    %v1045 = vpop.xlane.xlu0 %1044
    %v1046 = vsub.f32 %v1042, %v1045
    %v1047 = vmul.f32 %v1046, 1.442695
    %v1048 = vpow.pop %v1047
    %v1049 = vsel %vm211, %v1048, 0.0
    %1050 = vadd.xlane.f32.xlu0 %v1049
    %v1051 = vpop.xlane.xlu0 %1050
    %v1052 = vrcp.pop %v1051
    %v1053 = vmul.f32 %v1051, %v1052
    %v1054 = vsub.f32 1.0, %v1053
    %v1055 = vmul.f32 %v1052, %v1054
    %v1056 = vadd.f32 %v1052, %v1055
    %vm1057 = vweird.f32 %v1051
    %vm1058 = vweird.f32 %v1052
    %vm1059 = vmor %vm1057, %vm1058
    %v1060 = vsel %vm1059, %v1052, %v1056
    %v1061 = vand.u32 2147483647, %v1051
    %vm1062 = vcmp.eq.f32.partialorder %v1061, 8.507059e+37
    %v1063 = vand.u32 %v1051, 2147483648
    %v1064 = vor.u32 1.1754944e-38, %v1063
    %v1065 = vsel %vm1062, %v1064, %v1060
    %v1066 = vmul.f32 %v1048, %v1065
    %1067 = vrot.lane.b32.xlu0 %v1013, 64
    %v1068 = vpop.permute.xlu0 %1067
    %v1070 = vsel %vm238, %v1066, 0
    %v1072 = vsel %vm242, %v1068, 0
    %1074 = vmatpush.msra.mxu0 0.0
    %1075 = vmatpush.msra.mxu0 0.0
    %1076 = vmatpush.msra.mxu0 0.0
    %1077 = vmatpush.msra.mxu0 0.0
    %1078 = vmatpush.msra.mxu0 0.0
    %1079 = vmatpush.msra.mxu0 0.0
    %1080 = vmatpush.msra.mxu0 0.0
    %1081 = vmatpush.msra.mxu0 0.0
    %1082 = vmatpush.msra.mxu0 0.0
    %1083 = vmatpush.msra.mxu0 0.0
    %1084 = vmatpush.msra.mxu0 0.0
    %1085 = vmatpush.msra.mxu0 0.0
    %1086 = vmatpush.msra.mxu0 0.0
    %1087 = vmatpush.msra.mxu0 0.0
    %1088 = vmatpush.msra.mxu0 0.0
    %1089 = vmatpush.msra.mxu0 %v1072
    %1090 = vmatmul.f32.gmra.mxu0 %v1070
    %v1091 = vpop.f32.mrf.mxu0
    %v1092 = vadd.f32 0.0, %v1091
    %1093 = vdwg.mxu0
    %1094 = vst.msk [vmem:[#allocation3] sm:$0x1f] %vm265, %v1092
    %1095 = vrot.lane.b32.xlu0 %v1013, 112
    %v1096 = vpop.permute.xlu0 %1095
    %1097 = vrot.lane.b32.xlu0 %v1013, 80
    %v1098 = vpop.permute.xlu0 %1097
    %v1099 = vsel %vm185, %v1096, 0
    %v1101 = vsel %vm185, %v1098, 0
    %1103 = vmatpush.xpose.msra.mxu0 0.0
    %1104 = vmatpush.xpose.msra.mxu0 0.0
    %1105 = vmatpush.xpose.msra.mxu0 0.0
    %1106 = vmatpush.xpose.msra.mxu0 0.0
    %1107 = vmatpush.xpose.msra.mxu0 0.0
    %1108 = vmatpush.xpose.msra.mxu0 0.0
    %1109 = vmatpush.xpose.msra.mxu0 0.0
    %1110 = vmatpush.xpose.msra.mxu0 0.0
    %1111 = vmatpush.xpose.msra.mxu0 0.0
    %1112 = vmatpush.xpose.msra.mxu0 0.0
    %1113 = vmatpush.xpose.msra.mxu0 0.0
    %1114 = vmatpush.xpose.msra.mxu0 0.0
    %1115 = vmatpush.xpose.msra.mxu0 0.0
    %1116 = vmatpush.xpose.msra.mxu0 0.0
    %1117 = vmatpush.xpose.msra.mxu0 0.0
    %1118 = vmatpush.xpose.msra.mxu0 %v1101
    %1119 = vmatmul.f32.gmra.mxu0 %v1099
    %v1120 = vpop.f32.mrf.mxu0
    %v1121 = vadd.f32 0.0, %v1120
    %1122 = vdwg.mxu0
    %v1123 = vmul.f32 %v1121, 0.25
    %v1124 = vsel %vm211, %v1123, -inf
    %1125 = vmax.xlane.f32.xlu0 %v1124
    %v1126 = vpop.xlane.xlu0 %1125
    %v1127 = vsub.f32 %v1123, %v1126
    %v1128 = vmul.f32 %v1127, 1.442695
    %v1129 = vpow.pop %v1128
    %v1130 = vsel %vm211, %v1129, 0.0
    %1131 = vadd.xlane.f32.xlu0 %v1130
    %v1132 = vpop.xlane.xlu0 %1131
    %v1133 = vrcp.pop %v1132
    %v1134 = vmul.f32 %v1132, %v1133
    %v1135 = vsub.f32 1.0, %v1134
    %v1136 = vmul.f32 %v1133, %v1135
    %v1137 = vadd.f32 %v1133, %v1136
    %vm1138 = vweird.f32 %v1132
    %vm1139 = vweird.f32 %v1133
    %vm1140 = vmor %vm1138, %vm1139
    %v1141 = vsel %vm1140, %v1133, %v1137
    %v1142 = vand.u32 2147483647, %v1132
    %vm1143 = vcmp.eq.f32.partialorder %v1142, 8.507059e+37
    %v1144 = vand.u32 %v1132, 2147483648
    %v1145 = vor.u32 1.1754944e-38, %v1144
    %v1146 = vsel %vm1143, %v1145, %v1141
    %v1147 = vmul.f32 %v1129, %v1146
    %1148 = vrot.lane.b32.xlu0 %v1013, 48
    %v1149 = vpop.permute.xlu0 %1148
    %v1151 = vsel %vm238, %v1147, 0
    %v1153 = vsel %vm242, %v1149, 0
    %1155 = vmatpush.msra.mxu0 0.0
    %1156 = vmatpush.msra.mxu0 0.0
    %1157 = vmatpush.msra.mxu0 0.0
    %1158 = vmatpush.msra.mxu0 0.0
    %1159 = vmatpush.msra.mxu0 0.0
    %1160 = vmatpush.msra.mxu0 0.0
    %1161 = vmatpush.msra.mxu0 0.0
    %1162 = vmatpush.msra.mxu0 0.0
    %1163 = vmatpush.msra.mxu0 0.0
    %1164 = vmatpush.msra.mxu0 0.0
    %1165 = vmatpush.msra.mxu0 0.0
    %1166 = vmatpush.msra.mxu0 0.0
    %1167 = vmatpush.msra.mxu0 0.0
    %1168 = vmatpush.msra.mxu0 0.0
    %1169 = vmatpush.msra.mxu0 0.0
    %1170 = vmatpush.msra.mxu0 %v1153
    %1171 = vmatmul.f32.gmra.mxu0 %v1151
    %v1172 = vpop.f32.mrf.mxu0
    %v1173 = vadd.f32 0.0, %v1172
    %1174 = vdwg.mxu0
    %1176 = vrot.lane.b32.xlu0 %v1173, 16
    %v1177 = vpop.permute.xlu0 %1176
    %1179 = vst.msk [vmem:[#allocation3] sm:$0x1f] %vm351, %v1177
    %v1180 = vld [vmem:[#allocation3] sm:$0x1f]
    %1185 = vrot.lane.b32.xlu0 %v952, 32
    %v1186 = vpop.permute.xlu0 %1185
    %1187 = vrot.lane.b32.xlu0 %v955, 32
    %v1188 = vpop.permute.xlu0 %1187
    %1189 = vrot.lane.b32.xlu0 %v958, 32
    %v1190 = vpop.permute.xlu0 %1189
    %1191 = vrot.lane.b32.xlu0 %v961, 32
    %v1192 = vpop.permute.xlu0 %1191
    %v1198 = vsel %vm158, %v1180, 0
    %1200 = vmatpush.msra.mxu0 0.0
    %1201 = vmatpush.msra.mxu0 0.0
    %1202 = vmatpush.msra.mxu0 0.0
    %1203 = vmatpush.msra.mxu0 0.0
    %1204 = vmatpush.msra.mxu0 0.0
    %1205 = vmatpush.msra.mxu0 0.0
    %1206 = vmatpush.msra.mxu0 0.0
    %1207 = vmatpush.msra.mxu0 0.0
    %1208 = vmatpush.msra.mxu0 0.0
    %1209 = vmatpush.msra.mxu0 0.0
    %1210 = vmatpush.msra.mxu0 0.0
    %1211 = vmatpush.msra.mxu0 0.0
    %1212 = vmatpush.msra.mxu0 %v1192
    %1213 = vmatpush.msra.mxu0 %v1190
    %1214 = vmatpush.msra.mxu0 %v1188
    %1215 = vmatpush.msra.mxu0 %v1186
    %1216 = vmatmul.f32.gmra.mxu0 %v1198
    %v1217 = vpop.f32.mrf.mxu0
    %v1218 = vadd.f32 0.0, %v1217
    %1219 = vdwg.mxu0
    %v1220 = vadd.f32 %v951, %v1218
    %v1221 = vperm.slane %v964, 3
    %v1222 = vadd.f32 %v1220, %v1221
    %v1223 = vsel %vm123, %v1222, 0.0
    %1224 = vadd.xlane.f32.xlu0 %v1223
    %v1225 = vpop.xlane.xlu0 %1224
    %v1226 = vmul.f32 %v1225, %v133
    %v1227 = vsub.f32 %v1222, %v1226
    %v1228 = vmul.f32 %v1227, %v1227
    %v1229 = vsel %vm123, %v1228, 0.0
    %1230 = vadd.xlane.f32.xlu0 %v1229
    %v1231 = vpop.xlane.xlu0 %1230
    %v1232 = vmul.f32 %v1231, %v133
    %v1233 = vadd.f32 %v1232, 1e-12
    %v1234 = vrsqrt.pop %v1233
    %v1235 = vmul.f32 %v1234, %v1233
    %v1236 = vmul.f32 %v1235, %v1234
    %v1237 = vmul.f32 0.5, %v1236
    %v1238 = vsub.f32 1.5, %v1237
    %v1239 = vmul.f32 %v1234, %v1238
    %vm1240 = vweird.f32 %v1233
    %vm1241 = vweird.f32 %v1234
    %vm1242 = vmor %vm1240, %vm1241
    %v1243 = vsel %vm1242, %v1234, %v1239
    %v1244 = vmul.f32 %v1227, %v1243
    %v1245 = vperm.slane %v964, 4
    %v1246 = vmul.f32 %v1244, %v1245
    %v1247 = vperm.slane %v964, 5
    %v1248 = vadd.f32 %v1246, %v1247
    %v1249 = vperm.slane %v964, 6
    %v1251 = vsel %vm158, %v1248, 0
    %1253 = vmatpush.msra.mxu0 0.0
    %1254 = vmatpush.msra.mxu0 0.0
    %1255 = vmatpush.msra.mxu0 0.0
    %1256 = vmatpush.msra.mxu0 0.0
    %1257 = vmatpush.msra.mxu0 0.0
    %1258 = vmatpush.msra.mxu0 0.0
    %1259 = vmatpush.msra.mxu0 0.0
    %1260 = vmatpush.msra.mxu0 0.0
    %1261 = vmatpush.msra.mxu0 0.0
    %1262 = vmatpush.msra.mxu0 0.0
    %1263 = vmatpush.msra.mxu0 0.0
    %1264 = vmatpush.msra.mxu0 0.0
    %1265 = vmatpush.msra.mxu0 %v962
    %1266 = vmatpush.msra.mxu0 %v959
    %1267 = vmatpush.msra.mxu0 %v956
    %1268 = vmatpush.msra.mxu0 %v953
    %1269 = vmatmul.f32.gmra.mxu0 %v1251
    %v1270 = vpop.f32.mrf.mxu0
    %v1271 = vadd.f32 %v1249, %v1270
    %1272 = vdwg.mxu0
    %v1273 = vmul.f32 %v1271, %v1271
    %v1274 = vmul.f32 %v1271, %v1273
    %v1275 = vmul.f32 %v1274, 0.044715
    %v1276 = vadd.f32 %v1271, %v1275
    %v1277 = vmul.f32 %v1276, 0.7978846
    %v1278 = vtanh.pop %v1277
    %v1279 = vadd.f32 %v1278, 1.0
    %v1280 = vmul.f32 %v1279, 0.5
    %v1281 = vmul.f32 %v1271, %v1280
    %v1282 = vperm.slane %v964, 7
    %1283 = vmatpush.xpose.msra.mxu0 0.0
    %1284 = vmatpush.xpose.msra.mxu0 0.0
    %1285 = vmatpush.xpose.msra.mxu0 0.0
    %1286 = vmatpush.xpose.msra.mxu0 0.0
    %1287 = vmatpush.xpose.msra.mxu0 0.0
    %1288 = vmatpush.xpose.msra.mxu0 0.0
    %1289 = vmatpush.xpose.msra.mxu0 0.0
    %1290 = vmatpush.xpose.msra.mxu0 0.0
    %1291 = vmatpush.xpose.msra.mxu0 0.0
    %1292 = vmatpush.xpose.msra.mxu0 0.0
    %1293 = vmatpush.xpose.msra.mxu0 0.0
    %1294 = vmatpush.xpose.msra.mxu0 0.0
    %1295 = vmatpush.xpose.msra.mxu0 %v963
    %1296 = vmatpush.xpose.msra.mxu0 %v960
    %1297 = vmatpush.xpose.msra.mxu0 %v957
    %1298 = vmatpush.xpose.msra.mxu0 %v954
    %1299 = vmatmul.f32.gmra.mxu0 %v1281
    %v1300 = vpop.f32.mrf.mxu0
    %v1301 = vadd.f32 %v1282, %v1300
    %1302 = vdwg.mxu0
    %v1303 = vadd.f32 %v1222, %v1301
    %v1304 = vld [vmem:[%s477] sm:$0xff]
    %v1305 = vld [vmem:[%s477 + $0x8] sm:$0xff]
    %v1306 = vld [vmem:[%s477 + $0x10] sm:$0xff]
    %v1307 = vld [vmem:[%s477 + $0x18] sm:$0xff]
    %v1308 = vld [vmem:[%s477 + $0x20] sm:$0xff]
    %v1309 = vld [vmem:[%s477 + $0x28] sm:$0xff]
    %v1310 = vld [vmem:[%s477 + $0x30] sm:$0xff]
    %v1311 = vld [vmem:[%s477 + $0x38] sm:$0xff]
    %v1312 = vld [vmem:[%s477 + $0x40] sm:$0xff]
    %v1313 = vld [vmem:[%s477 + $0x48] sm:$0xff]
    %v1314 = vld [vmem:[%s477 + $0x50] sm:$0xff]
    %v1315 = vld [vmem:[%s477 + $0x58] sm:$0xff]
    %v1316 = vld [vmem:[%s490] sm:$0xff]
    %v1317 = vsel %vm123, %v1303, 0.0
    %1318 = vadd.xlane.f32.xlu0 %v1317
    %v1319 = vpop.xlane.xlu0 %1318
    %v1320 = vmul.f32 %v1319, %v133
    %v1321 = vsub.f32 %v1303, %v1320
    %v1322 = vmul.f32 %v1321, %v1321
    %v1323 = vsel %vm123, %v1322, 0.0
    %1324 = vadd.xlane.f32.xlu0 %v1323
    %v1325 = vpop.xlane.xlu0 %1324
    %v1326 = vmul.f32 %v1325, %v133
    %v1327 = vadd.f32 %v1326, 1e-12
    %v1328 = vrsqrt.pop %v1327
    %v1329 = vmul.f32 %v1328, %v1327
    %v1330 = vmul.f32 %v1329, %v1328
    %v1331 = vmul.f32 0.5, %v1330
    %v1332 = vsub.f32 1.5, %v1331
    %v1333 = vmul.f32 %v1328, %v1332
    %vm1334 = vweird.f32 %v1327
    %vm1335 = vweird.f32 %v1328
    %vm1336 = vmor %vm1334, %vm1335
    %v1337 = vsel %vm1336, %v1328, %v1333
    %v1338 = vmul.f32 %v1321, %v1337
    %v1339 = vperm.slane %v1316, 0
    %v1340 = vmul.f32 %v1338, %v1339
    %v1341 = vperm.slane %v1316, 1
    %v1342 = vadd.f32 %v1340, %v1341
    %v1343 = vperm.slane %v1316, 2
    %v1345 = vsel %vm158, %v1342, 0
    %1347 = vmatpush.msra.mxu0 0.0
    %1348 = vmatpush.msra.mxu0 0.0
    %1349 = vmatpush.msra.mxu0 0.0
    %1350 = vmatpush.msra.mxu0 0.0
    %1351 = vmatpush.msra.mxu0 0.0
    %1352 = vmatpush.msra.mxu0 0.0
    %1353 = vmatpush.msra.mxu0 0.0
    %1354 = vmatpush.msra.mxu0 0.0
    %1355 = vmatpush.msra.mxu0 0.0
    %1356 = vmatpush.msra.mxu0 0.0
    %1357 = vmatpush.msra.mxu0 0.0
    %1358 = vmatpush.msra.mxu0 0.0
    %1359 = vmatpush.msra.mxu0 %v1313
    %1360 = vmatpush.msra.mxu0 %v1310
    %1361 = vmatpush.msra.mxu0 %v1307
    %1362 = vmatpush.msra.mxu0 %v1304
    %1363 = vmatmul.f32.gmra.mxu0 %v1345
    %v1364 = vpop.f32.mrf.mxu0
    %v1365 = vadd.f32 %v1343, %v1364
    %1366 = vdwg.mxu0
    %1368 = vrot.lane.b32.xlu0 %v1365, 96
    %v1369 = vpop.permute.xlu0 %1368
    %v1370 = vsel %vm185, %v1365, 0
    %v1372 = vsel %vm185, %v1369, 0
    %1374 = vmatpush.xpose.msra.mxu0 0.0
    %1375 = vmatpush.xpose.msra.mxu0 0.0
    %1376 = vmatpush.xpose.msra.mxu0 0.0
    %1377 = vmatpush.xpose.msra.mxu0 0.0
    %1378 = vmatpush.xpose.msra.mxu0 0.0
    %1379 = vmatpush.xpose.msra.mxu0 0.0
    %1380 = vmatpush.xpose.msra.mxu0 0.0
    %1381 = vmatpush.xpose.msra.mxu0 0.0
    %1382 = vmatpush.xpose.msra.mxu0 0.0
    %1383 = vmatpush.xpose.msra.mxu0 0.0
    %1384 = vmatpush.xpose.msra.mxu0 0.0
    %1385 = vmatpush.xpose.msra.mxu0 0.0
    %1386 = vmatpush.xpose.msra.mxu0 0.0
    %1387 = vmatpush.xpose.msra.mxu0 0.0
    %1388 = vmatpush.xpose.msra.mxu0 0.0
    %1389 = vmatpush.xpose.msra.mxu0 %v1372
    %1390 = vmatmul.f32.gmra.mxu0 %v1370
    %v1391 = vpop.f32.mrf.mxu0
    %v1392 = vadd.f32 0.0, %v1391
    %1393 = vdwg.mxu0
    %v1394 = vmul.f32 %v1392, 0.25
    %v1395 = vsel %vm211, %v1394, -inf
    %1396 = vmax.xlane.f32.xlu0 %v1395
    %v1397 = vpop.xlane.xlu0 %1396
    %v1398 = vsub.f32 %v1394, %v1397
    %v1399 = vmul.f32 %v1398, 1.442695
    %v1400 = vpow.pop %v1399
    %v1401 = vsel %vm211, %v1400, 0.0
    %1402 = vadd.xlane.f32.xlu0 %v1401
    %v1403 = vpop.xlane.xlu0 %1402
    %v1404 = vrcp.pop %v1403
    %v1405 = vmul.f32 %v1403, %v1404
    %v1406 = vsub.f32 1.0, %v1405
    %v1407 = vmul.f32 %v1404, %v1406
    %v1408 = vadd.f32 %v1404, %v1407
    %vm1409 = vweird.f32 %v1403
    %vm1410 = vweird.f32 %v1404
    %vm1411 = vmor %vm1409, %vm1410
    %v1412 = vsel %vm1411, %v1404, %v1408
    %v1413 = vand.u32 2147483647, %v1403
    %vm1414 = vcmp.eq.f32.partialorder %v1413, 8.507059e+37
    %v1415 = vand.u32 %v1403, 2147483648
    %v1416 = vor.u32 1.1754944e-38, %v1415
    %v1417 = vsel %vm1414, %v1416, %v1412
    %v1418 = vmul.f32 %v1400, %v1417
    %1419 = vrot.lane.b32.xlu0 %v1365, 64
    %v1420 = vpop.permute.xlu0 %1419
    %v1422 = vsel %vm238, %v1418, 0
    %v1424 = vsel %vm242, %v1420, 0
    %1426 = vmatpush.msra.mxu0 0.0
    %1427 = vmatpush.msra.mxu0 0.0
    %1428 = vmatpush.msra.mxu0 0.0
    %1429 = vmatpush.msra.mxu0 0.0
    %1430 = vmatpush.msra.mxu0 0.0
    %1431 = vmatpush.msra.mxu0 0.0
    %1432 = vmatpush.msra.mxu0 0.0
    %1433 = vmatpush.msra.mxu0 0.0
    %1434 = vmatpush.msra.mxu0 0.0
    %1435 = vmatpush.msra.mxu0 0.0
    %1436 = vmatpush.msra.mxu0 0.0
    %1437 = vmatpush.msra.mxu0 0.0
    %1438 = vmatpush.msra.mxu0 0.0
    %1439 = vmatpush.msra.mxu0 0.0
    %1440 = vmatpush.msra.mxu0 0.0
    %1441 = vmatpush.msra.mxu0 %v1424
    %1442 = vmatmul.f32.gmra.mxu0 %v1422
    %v1443 = vpop.f32.mrf.mxu0
    %v1444 = vadd.f32 0.0, %v1443
    %1445 = vdwg.mxu0
    %1446 = vst.msk [vmem:[#allocation3] sm:$0x1f] %vm265, %v1444
    %1447 = vrot.lane.b32.xlu0 %v1365, 112
    %v1448 = vpop.permute.xlu0 %1447
    %1449 = vrot.lane.b32.xlu0 %v1365, 80
    %v1450 = vpop.permute.xlu0 %1449
    %v1451 = vsel %vm185, %v1448, 0
    %v1453 = vsel %vm185, %v1450, 0
    %1455 = vmatpush.xpose.msra.mxu0 0.0
    %1456 = vmatpush.xpose.msra.mxu0 0.0
    %1457 = vmatpush.xpose.msra.mxu0 0.0
    %1458 = vmatpush.xpose.msra.mxu0 0.0
    %1459 = vmatpush.xpose.msra.mxu0 0.0
    %1460 = vmatpush.xpose.msra.mxu0 0.0
    %1461 = vmatpush.xpose.msra.mxu0 0.0
    %1462 = vmatpush.xpose.msra.mxu0 0.0
    %1463 = vmatpush.xpose.msra.mxu0 0.0
    %1464 = vmatpush.xpose.msra.mxu0 0.0
    %1465 = vmatpush.xpose.msra.mxu0 0.0
    %1466 = vmatpush.xpose.msra.mxu0 0.0
    %1467 = vmatpush.xpose.msra.mxu0 0.0
    %1468 = vmatpush.xpose.msra.mxu0 0.0
    %1469 = vmatpush.xpose.msra.mxu0 0.0
    %1470 = vmatpush.xpose.msra.mxu0 %v1453
    %1471 = vmatmul.f32.gmra.mxu0 %v1451
    %v1472 = vpop.f32.mrf.mxu0
    %v1473 = vadd.f32 0.0, %v1472
    %1474 = vdwg.mxu0
    %v1475 = vmul.f32 %v1473, 0.25
    %v1476 = vsel %vm211, %v1475, -inf
    %1477 = vmax.xlane.f32.xlu0 %v1476
    %v1478 = vpop.xlane.xlu0 %1477
    %v1479 = vsub.f32 %v1475, %v1478
    %v1480 = vmul.f32 %v1479, 1.442695
    %v1481 = vpow.pop %v1480
    %v1482 = vsel %vm211, %v1481, 0.0
    %1483 = vadd.xlane.f32.xlu0 %v1482
    %v1484 = vpop.xlane.xlu0 %1483
    %v1485 = vrcp.pop %v1484
    %v1486 = vmul.f32 %v1484, %v1485
    %v1487 = vsub.f32 1.0, %v1486
    %v1488 = vmul.f32 %v1485, %v1487
    %v1489 = vadd.f32 %v1485, %v1488
    %vm1490 = vweird.f32 %v1484
    %vm1491 = vweird.f32 %v1485
    %vm1492 = vmor %vm1490, %vm1491
    %v1493 = vsel %vm1492, %v1485, %v1489
    %v1494 = vand.u32 2147483647, %v1484
    %vm1495 = vcmp.eq.f32.partialorder %v1494, 8.507059e+37
    %v1496 = vand.u32 %v1484, 2147483648
    %v1497 = vor.u32 1.1754944e-38, %v1496
    %v1498 = vsel %vm1495, %v1497, %v1493
    %v1499 = vmul.f32 %v1481, %v1498
    %1500 = vrot.lane.b32.xlu0 %v1365, 48
    %v1501 = vpop.permute.xlu0 %1500
    %v1503 = vsel %vm238, %v1499, 0
    %v1505 = vsel %vm242, %v1501, 0
    %1507 = vmatpush.msra.mxu0 0.0
    %1508 = vmatpush.msra.mxu0 0.0
    %1509 = vmatpush.msra.mxu0 0.0
    %1510 = vmatpush.msra.mxu0 0.0
    %1511 = vmatpush.msra.mxu0 0.0
    %1512 = vmatpush.msra.mxu0 0.0
    %1513 = vmatpush.msra.mxu0 0.0
    %1514 = vmatpush.msra.mxu0 0.0
    %1515 = vmatpush.msra.mxu0 0.0
    %1516 = vmatpush.msra.mxu0 0.0
    %1517 = vmatpush.msra.mxu0 0.0
    %1518 = vmatpush.msra.mxu0 0.0
    %1519 = vmatpush.msra.mxu0 0.0
    %1520 = vmatpush.msra.mxu0 0.0
    %1521 = vmatpush.msra.mxu0 0.0
    %1522 = vmatpush.msra.mxu0 %v1505
    %1523 = vmatmul.f32.gmra.mxu0 %v1503
    %v1524 = vpop.f32.mrf.mxu0
    %v1525 = vadd.f32 0.0, %v1524
    %1526 = vdwg.mxu0
    %1528 = vrot.lane.b32.xlu0 %v1525, 16
    %v1529 = vpop.permute.xlu0 %1528
    %1531 = vst.msk [vmem:[#allocation3] sm:$0x1f] %vm351, %v1529
    %v1532 = vld [vmem:[#allocation3] sm:$0x1f]
    %1537 = vrot.lane.b32.xlu0 %v1304, 32
    %v1538 = vpop.permute.xlu0 %1537
    %1539 = vrot.lane.b32.xlu0 %v1307, 32
    %v1540 = vpop.permute.xlu0 %1539
    %1541 = vrot.lane.b32.xlu0 %v1310, 32
    %v1542 = vpop.permute.xlu0 %1541
    %1543 = vrot.lane.b32.xlu0 %v1313, 32
    %v1544 = vpop.permute.xlu0 %1543
    %v1550 = vsel %vm158, %v1532, 0
    %1552 = vmatpush.msra.mxu0 0.0
    %1553 = vmatpush.msra.mxu0 0.0
    %1554 = vmatpush.msra.mxu0 0.0
    %1555 = vmatpush.msra.mxu0 0.0
    %1556 = vmatpush.msra.mxu0 0.0
    %1557 = vmatpush.msra.mxu0 0.0
    %1558 = vmatpush.msra.mxu0 0.0
    %1559 = vmatpush.msra.mxu0 0.0
    %1560 = vmatpush.msra.mxu0 0.0
    %1561 = vmatpush.msra.mxu0 0.0
    %1562 = vmatpush.msra.mxu0 0.0
    %1563 = vmatpush.msra.mxu0 0.0
    %1564 = vmatpush.msra.mxu0 %v1544
    %1565 = vmatpush.msra.mxu0 %v1542
    %1566 = vmatpush.msra.mxu0 %v1540
    %1567 = vmatpush.msra.mxu0 %v1538
    %1568 = vmatmul.f32.gmra.mxu0 %v1550
    %v1569 = vpop.f32.mrf.mxu0
    %v1570 = vadd.f32 0.0, %v1569
    %1571 = vdwg.mxu0
    %v1572 = vadd.f32 %v1303, %v1570
    %v1573 = vperm.slane %v1316, 3
    %v1574 = vadd.f32 %v1572, %v1573
    %v1575 = vsel %vm123, %v1574, 0.0
    %1576 = vadd.xlane.f32.xlu0 %v1575
    %v1577 = vpop.xlane.xlu0 %1576
    %v1578 = vmul.f32 %v1577, %v133
    %v1579 = vsub.f32 %v1574, %v1578
    %v1580 = vmul.f32 %v1579, %v1579
    %v1581 = vsel %vm123, %v1580, 0.0
    %1582 = vadd.xlane.f32.xlu0 %v1581
    %v1583 = vpop.xlane.xlu0 %1582
    %v1584 = vmul.f32 %v1583, %v133
    %v1585 = vadd.f32 %v1584, 1e-12
    %v1586 = vrsqrt.pop %v1585
    %v1587 = vmul.f32 %v1586, %v1585
    %v1588 = vmul.f32 %v1587, %v1586
    %v1589 = vmul.f32 0.5, %v1588
    %v1590 = vsub.f32 1.5, %v1589
    %v1591 = vmul.f32 %v1586, %v1590
    %vm1592 = vweird.f32 %v1585
    %vm1593 = vweird.f32 %v1586
    %vm1594 = vmor %vm1592, %vm1593
    %v1595 = vsel %vm1594, %v1586, %v1591
    %v1596 = vmul.f32 %v1579, %v1595
    %v1597 = vperm.slane %v1316, 4
    %v1598 = vmul.f32 %v1596, %v1597
    %v1599 = vperm.slane %v1316, 5
    %v1600 = vadd.f32 %v1598, %v1599
    %v1601 = vperm.slane %v1316, 6
    %v1603 = vsel %vm158, %v1600, 0
    %1605 = vmatpush.msra.mxu0 0.0
    %1606 = vmatpush.msra.mxu0 0.0
    %1607 = vmatpush.msra.mxu0 0.0
    %1608 = vmatpush.msra.mxu0 0.0
    %1609 = vmatpush.msra.mxu0 0.0
    %1610 = vmatpush.msra.mxu0 0.0
    %1611 = vmatpush.msra.mxu0 0.0
    %1612 = vmatpush.msra.mxu0 0.0
    %1613 = vmatpush.msra.mxu0 0.0
    %1614 = vmatpush.msra.mxu0 0.0
    %1615 = vmatpush.msra.mxu0 0.0
    %1616 = vmatpush.msra.mxu0 0.0
    %1617 = vmatpush.msra.mxu0 %v1314
    %1618 = vmatpush.msra.mxu0 %v1311
    %1619 = vmatpush.msra.mxu0 %v1308
    %1620 = vmatpush.msra.mxu0 %v1305
    %1621 = vmatmul.f32.gmra.mxu0 %v1603
    %v1622 = vpop.f32.mrf.mxu0
    %v1623 = vadd.f32 %v1601, %v1622
    %1624 = vdwg.mxu0
    %v1625 = vmul.f32 %v1623, %v1623
    %v1626 = vmul.f32 %v1623, %v1625
    %v1627 = vmul.f32 %v1626, 0.044715
    %v1628 = vadd.f32 %v1623, %v1627
    %v1629 = vmul.f32 %v1628, 0.7978846
    %v1630 = vtanh.pop %v1629
    %v1631 = vadd.f32 %v1630, 1.0
    %v1632 = vmul.f32 %v1631, 0.5
    %v1633 = vmul.f32 %v1623, %v1632
    %v1634 = vperm.slane %v1316, 7
    %1635 = vmatpush.xpose.msra.mxu0 0.0
    %1636 = vmatpush.xpose.msra.mxu0 0.0
    %1637 = vmatpush.xpose.msra.mxu0 0.0
    %1638 = vmatpush.xpose.msra.mxu0 0.0
    %1639 = vmatpush.xpose.msra.mxu0 0.0
    %1640 = vmatpush.xpose.msra.mxu0 0.0
    %1641 = vmatpush.xpose.msra.mxu0 0.0
    %1642 = vmatpush.xpose.msra.mxu0 0.0
    %1643 = vmatpush.xpose.msra.mxu0 0.0
    %1644 = vmatpush.xpose.msra.mxu0 0.0
    %1645 = vmatpush.xpose.msra.mxu0 0.0
    %1646 = vmatpush.xpose.msra.mxu0 0.0
    %1647 = vmatpush.xpose.msra.mxu0 %v1315
    %1648 = vmatpush.xpose.msra.mxu0 %v1312
    %1649 = vmatpush.xpose.msra.mxu0 %v1309
    %1650 = vmatpush.xpose.msra.mxu0 %v1306
    %1651 = vmatmul.f32.gmra.mxu0 %v1633
    %v1652 = vpop.f32.mrf.mxu0
    %v1653 = vadd.f32 %v1634, %v1652
    %1654 = vdwg.mxu0
    %v1655 = vadd.f32 %v1574, %v1653
    %v1656 = vsel %vm123, %v1655, 0.0
    %1657 = vadd.xlane.f32.xlu0 %v1656
    %v1658 = vpop.xlane.xlu0 %1657
    %v1659 = vmul.f32 %v1658, %v133
    %v1660 = vsub.f32 %v1655, %v1659
    %v1661 = vmul.f32 %v1660, %v1660
    %v1662 = vsel %vm123, %v1661, 0.0
    %1663 = vadd.xlane.f32.xlu0 %v1662
    %v1664 = vpop.xlane.xlu0 %1663
    %v1665 = vmul.f32 %v1664, %v133
    %v1666 = vadd.f32 %v1665, 1e-12
    %v1667 = vrsqrt.pop %v1666
    %v1668 = vmul.f32 %v1667, %v1666
    %v1669 = vmul.f32 %v1668, %v1667
    %v1670 = vmul.f32 0.5, %v1669
    %v1671 = vsub.f32 1.5, %v1670
    %v1672 = vmul.f32 %v1667, %v1671
    %vm1673 = vweird.f32 %v1666
    %vm1674 = vweird.f32 %v1667
    %vm1675 = vmor %vm1673, %vm1674
    %v1676 = vsel %vm1675, %v1667, %v1672
    %v1677 = vmul.f32 %v1660, %v1676
    %v1678 = vmul.f32 %v1677, %v853
    %v1679 = vadd.f32 %v1678, %v855
    %v1681 = vrot.slane %v1679, 1
    %v1682 = vsel %vm158, %v1681, 0
    %1684 = vmatpush.msra.mxu0 0.0
    %1685 = vmatpush.msra.mxu0 0.0
    %1686 = vmatpush.msra.mxu0 0.0
    %1687 = vmatpush.msra.mxu0 0.0
    %1688 = vmatpush.msra.mxu0 0.0
    %1689 = vmatpush.msra.mxu0 0.0
    %1690 = vmatpush.msra.mxu0 0.0
    %1691 = vmatpush.msra.mxu0 0.0
    %1692 = vmatpush.msra.mxu0 0.0
    %1693 = vmatpush.msra.mxu0 0.0
    %1694 = vmatpush.msra.mxu0 0.0
    %1695 = vmatpush.msra.mxu0 0.0
    %1696 = vmatpush.msra.mxu0 %v45
    %1697 = vmatpush.msra.mxu0 %v44
    %1698 = vmatpush.msra.mxu0 %v43
    %1699 = vmatpush.msra.mxu0 %v42
    %1700 = vmatmul.f32.gmra.mxu0 %v1682
    %v1701 = vpop.f32.mrf.mxu0
    %v1702 = vadd.f32 %v857, %v1701
    %1703 = vdwg.mxu0
    %v1705 = vrot.slane %v1702, 1
    %1706 = vrot.lane.b32.xlu0 %v1705, 32
    %v1707 = vpop.permute.xlu0 %1706
    %v1709 = vrot.slane %v1702, 2
    %1710 = vrot.lane.b32.xlu0 %v1709, 64
    %v1711 = vpop.permute.xlu0 %1710
    %v1713 = vrot.slane %v1702, 3
    %1714 = vrot.lane.b32.xlu0 %v1713, 96
    %v1715 = vpop.permute.xlu0 %1714
    %v1717 = vsel %vm158, %v1702, %v1707
    %v1718 = vsel %vm55, %v1717, %v1711
    %v1719 = vsel %vm897, %v1718, %v1715
    %v1721 = vrot.slane %v1719, 7
    %vm1723 = vcmask 1040384
    %v1724 = vsel %vm1723, %v898, %v1721
    %1725 = vst [vmem:[#allocation4] sm:$0x3] %v1724
    // Predicated region
    $region18: #{tpu_custom_call.1} parent=1 // pred_check
      _
    $region19: #{tpu_custom_call.1} parent=1 // pred_check_branch
      %1727 = sbr.rel (0) target = $region21
    $region20: #{tpu_custom_call.1} parent=1 // pred_region
      %1729 = vsyncadd [#allocation5], 0
      %s1731 = sshll.u32 [#allocation4], 4
      %s1732 = int_to_ptr.vmem [resolvable:$true] %s1731
      %s1733 = sshll.u32 %s4, 4
      %s1734 = int_to_ptr.hbm [resolvable:$true] %s1733
      %1736 = dma.vmem_to_hbm [thread:$0]  %s1732, 32, %s1734, [#allocation5]
    $region21: #{tpu_custom_call.1} parent=1 // pred_fallthru
      _
    // Predicated region
    $region22: #{tpu_custom_call.1} parent=1 // pred_check
      _
    $region23: #{tpu_custom_call.1} parent=1 // pred_check_branch
      %1738 = sbr.rel (0) target = $region25
    $region24: #{tpu_custom_call.1} parent=1 // pred_region
      %1740 = dma.done [#allocation5], 32
    $region25: #{tpu_custom_call.1} parent=1 // pred_fallthru
      _
    %1741 = vsyncpa [#allocation5], 1

</llo_original>
